<compile_context>
chip_gen: v7x
topology: tpu7x:2x2x1
jax: 0.10.0
libtpu: 0.0.40
codegen_flags: <defaults>
</compile_context>

<pallas_src>
import math
import numpy as np
import jax
import jax.numpy as jnp
from jax import lax
from jax.experimental import pallas as pl
from jax.experimental.pallas import tpu as pltpu  # noqa: F401  (imported for TPU backend symmetry)

# ---------------- config (the PyTorch `p` namespace) ----------------
B, S = 2, 8
D_X = 32                      # d_x = d_h
N_I = 4                       # heads
D_Q = D_K = D_V = D_R = 8
D_HEADS = N_I * D_V           # 32
QKVR_W = 4 * D_HEADS          # 128 -> exactly one lane-dense vreg row
SLAB_W = 256                  # merged weight slab width (QKVR | Wo | zero pad)
_BIAS_ROW = D_X               # row 32 of the slab holds all biases

_OFF_Q, _OFF_K, _OFF_V, _OFF_R = 0, D_HEADS, 2 * D_HEADS, 3 * D_HEADS
_INV_SCALE = 1.0 / math.sqrt(D_K)


# ---------------- Pallas kernel: whole problem in one invocation, no grid ----------------
def self_attention_kernel(x_ref, mask_ref, w_ref, out_ref):
    """
    x_ref    : (B*S, D_X)      flattened (batch, seq) rows
    mask_ref : (B, S, S)       0 => masked position (broadcast over heads)
    w_ref    : (D_X+1, 256)    lanes [0:128] rows[0:32]=[Wq^T|Wk^T|Wv^T|Wr^T], row 32 = packed bias
                               lanes [128:160] rows[0:32]=Wo^T, row 32 = b_o; lanes[160:256]=0
    out_ref  : (B*S, D_X)
    """
    x = x_ref[...]                                              # (16, 32)
    w_qkvr = w_ref[:D_X, 0:QKVR_W]                              # (32, 128)
    w_o = w_ref[:D_HEADS, QKVR_W:QKVR_W + D_X]                  # (32, 32)   (in, out) layout
    bias_row = w_ref[_BIAS_ROW, :]                              # (256,)
    b_qkvr = bias_row[0:QKVR_W]                                 # (128,)
    b_o = bias_row[QKVR_W:QKVR_W + D_X]                         # (32,)

    # Single lane-dense fused Q/K/V/R projection.
    packed = jnp.dot(x, w_qkvr, preferred_element_type=jnp.float32) + b_qkvr[None, :]  # (16, 128)

    # Gather per-head slices into one (n_I*B, S, d) batch (g = h*B + b).
    def gather(base):
        parts = [packed[:, base + h * D_Q: base + (h + 1) * D_Q].reshape(B, S, D_Q)
                 for h in range(N_I)]
        return jnp.concatenate(parts, axis=0)                   # (N_I*B, S, D)

    q = gather(_OFF_Q)
    k = gather(_OFF_K)
    v = gather(_OFF_V)
    r = gather(_OFF_R)

    # One batched score matmul for all (batch, head) pairs.
    scores = jnp.einsum('gid,gjd->gij', q, k,
                        preferred_element_type=jnp.float32) * _INV_SCALE      # (8, 8, 8)

    # Hard mask (matches torch masked_fill(mask == 0, -1e10)), broadcast over heads.
    scores = scores.reshape(N_I, B, S, S)
    scores = jnp.where(mask_ref[...] == 0.0, jnp.float32(-1e10), scores)
    scores = scores.reshape(N_I * B, S, S)

    # One stable-softmax pass over the full (n_I*B, S, S) tensor.
    m = jnp.max(scores, axis=-1, keepdims=True)
    e = jnp.exp(scores - m)
    att = e * pl.reciprocal(jnp.sum(e, axis=-1, keepdims=True), approx=True)
    # TODO(synk): attention dropout (p.dropout) treated as eval-mode identity (no RNG in kernel).

    # One batched att @ V, then the R gating.
    v_bar = jnp.einsum('gij,gjd->gid', att, v,
                       preferred_element_type=jnp.float32)                    # (8, 8, 8)
    new_v = v_bar * r                                                         # (N_I*B, S, D_V)

    # Reassemble (B*S, n_I*d_v) and do a single output projection matmul.
    pieces = [new_v[h * B:(h + 1) * B].reshape(B * S, D_V) for h in range(N_I)]
    flat = jnp.concatenate(pieces, axis=-1)                                   # (16, 32)

    out_ref[...] = jnp.dot(flat, w_o, preferred_element_type=jnp.float32) + b_o[None, :]


# ---------------- wrapper ----------------
@jax.jit
def self_attention(x, mask, w_slab):
    """x: (B, S, D_X) f32; mask: (B, 1, S, S) f32 (broadcast over heads)."""
    Bq, Sq, D = x.shape
    x2 = x.reshape(Bq * Sq, D)
    mask2 = mask[:, 0]                                           # (B, S, S)
    out = pl.pallas_call(
        self_attention_kernel,
        out_shape=jax.ShapeDtypeStruct((Bq * Sq, D), jnp.float32),
    )(x2, mask2, w_slab)
    return out.reshape(Bq, Sq, D)


# ---------------- parameter init / packing ----------------
def init_params(key):
    ks = jax.random.split(key, 10)

    def lin(kw, kb, out_dim, in_dim, std):
        w = jax.random.normal(kw, (out_dim, in_dim), jnp.float32) * std       # torch layout (out, in)
        b = jax.random.normal(kb, (out_dim,), jnp.float32) * 0.02
        return w, b

    wq, bq = lin(ks[0], ks[1], N_I * D_Q, D_X, 1.0 / math.sqrt(D_X))
    wk, bk = lin(ks[2], ks[3], N_I * D_K, D_X, 1.0 / math.sqrt(D_X))
    wv, bv = lin(ks[4], ks[5], N_I * D_V, D_X, 1.0 / math.sqrt(D_X))
    wr, br = lin(ks[6], ks[7], N_I * D_R, D_X, 1.0 / math.sqrt(D_R))
    wo, bo = lin(ks[8], ks[9], D_X, N_I * D_V, 1.0 / math.sqrt(N_I * D_V))
    return dict(wq=wq, bq=bq, wk=wk, bk=bk, wv=wv, bv=bv, wr=wr, br=br, wo=wo, bo=bo)


def pack_params(P):
    # lanes 0..127:   rows 0..31 = [Wq^T | Wk^T | Wv^T | Wr^T], row 32 = packed biases
    # lanes 128..159: rows 0..31 = Wo^T,                        row 32 = b_o
    # lanes 160..255: zero pad (keeps the slab two lane-dense vregs wide)
    w_qkvr = jnp.concatenate([P["wq"].T, P["wk"].T, P["wv"].T, P["wr"].T], axis=1)  # (32, 128)
    b_qkvr = jnp.concatenate([P["bq"], P["bk"], P["bv"], P["br"]], axis=0)          # (128,)
    top = jnp.concatenate([w_qkvr, P["wo"].T], axis=1)                              # (32, 160)
    bot = jnp.concatenate([b_qkvr, P["bo"]], axis=0)[None, :]                       # (1, 160)
    slab = jnp.concatenate([top, bot], axis=0)                                      # (33, 160)
    slab = jnp.pad(slab, ((0, 0), (0, SLAB_W - slab.shape[1])))                     # (33, 256)
    return slab


# ---------------- pure-JAX reference (mirrors the PyTorch forward) ----------------
def reference(x, mask, P):
    Bq, Sq, _ = x.shape

    def proj(w, b):                               # torch Linear: y = x @ W^T + b
        return x @ w.T + b

    def split_heads(t, dh):
        return jnp.transpose(t.reshape(Bq, Sq, N_I, dh), (0, 2, 1, 3))

    Q = split_heads(proj(P["wq"], P["bq"]), D_Q)
    K = split_heads(proj(P["wk"], P["bk"]), D_K)
    V = split_heads(proj(P["wv"], P["bv"]), D_V)
    R = split_heads(proj(P["wr"], P["br"]), D_R)

    dot = jnp.einsum('bhid,bhjd->bhij', Q, K) / math.sqrt(D_K)
    dot = jnp.where(mask == 0, -1e10, dot)        # (B,1,S,S) broadcasts over heads
    att = jax.nn.softmax(dot, axis=-1)
    v_bar = jnp.einsum('bhjd,bhij->bhid', V, att)
    new_v = jnp.transpose(v_bar * R, (0, 2, 1, 3)).reshape(Bq, Sq, N_I * D_V)
    return new_v @ P["wo"].T + P["bo"]


if __name__ == "__main__":
    key = jax.random.PRNGKey(0)
    k_x, k_p = jax.random.split(key)

    x = jax.random.normal(k_x, (B, S, D_X), jnp.float32)
    # causal mask, broadcast over heads (exercises the masking path)
    mask = jnp.broadcast_to(jnp.tril(jnp.ones((S, S), jnp.float32)), (B, 1, S, S))

    P = init_params(k_p)
    w_slab = pack_params(P)

    out = jax.block_until_ready(self_attention(x, mask, w_slab))
    ref = jax.block_until_ready(reference(x, mask, P))

    np.testing.assert_allclose(np.asarray(out), np.asarray(ref), rtol=1e-2, atol=1e-2)
    print("KERNEL_OK")
</pallas_src>

<mosaic_0001>
module attributes {stable_mosaic.version = 11 : i64} {
  func.func @self_attention_kernel(%arg0: memref<16x32xf32, #tpu.memory_space<vmem>>, %arg1: memref<2x8x8xf32, #tpu.memory_space<vmem>>, %arg2: memref<33x256xf32, #tpu.memory_space<vmem>>, %arg3: memref<16x32xf32, #tpu.memory_space<vmem>>) attributes {dimension_semantics = [], scalar_prefetch = 0 : i64, scratch_operands = 0 : i64, tpu.core_type = #tpu.core_type<tc>} {
    %c0 = arith.constant 0 : index
    %c0_0 = arith.constant 0 : index
    %0 = vector.load %arg0[%c0, %c0_0] : memref<16x32xf32, #tpu.memory_space<vmem>>, vector<16x32xf32>
    %c0_1 = arith.constant 0 : index
    %c0_2 = arith.constant 0 : index
    %1 = vector.load %arg2[%c0_1, %c0_2] : memref<33x256xf32, #tpu.memory_space<vmem>>, vector<32x128xf32>
    %c0_3 = arith.constant 0 : index
    %c128 = arith.constant 128 : index
    %2 = vector.load %arg2[%c0_3, %c128] : memref<33x256xf32, #tpu.memory_space<vmem>>, vector<32x32xf32>
    %c32 = arith.constant 32 : index
    %c0_4 = arith.constant 0 : index
    %3 = vector.load %arg2[%c32, %c0_4] : memref<33x256xf32, #tpu.memory_space<vmem>>, vector<1x256xf32>
    %4 = vector.shape_cast %3 : vector<1x256xf32> to vector<256xf32>
    %5 = vector.extract_strided_slice %4 {offsets = [0], sizes = [128], strides = [1]} : vector<256xf32> to vector<128xf32>
    %6 = vector.extract_strided_slice %4 {offsets = [128], sizes = [32], strides = [1]} : vector<256xf32> to vector<32xf32>
    %cst = arith.constant dense<0.000000e+00> : vector<16x128xf32>
    %7 = tpu.matmul %0, %1, %cst {dimension_numbers = #tpu.dot_dimension_numbers<[1], [0], [0], [1], [0, 0, 1, 1], [], []>} : vector<16x32xf32>, vector<32x128xf32>, vector<16x128xf32> -> vector<16x128xf32>
    %8 = vector.shape_cast %5 : vector<128xf32> to vector<1x128xf32>
    %9 = vector.broadcast %8 : vector<1x128xf32> to vector<16x128xf32>
    %10 = arith.addf %7, %9 : vector<16x128xf32>
    %11 = vector.extract_strided_slice %10 {offsets = [0, 0], sizes = [16, 8], strides = [1, 1]} : vector<16x128xf32> to vector<16x8xf32>
    %12 = vector.shape_cast %11 : vector<16x8xf32> to vector<2x8x8xf32>
    %13 = vector.extract_strided_slice %10 {offsets = [0, 8], sizes = [16, 8], strides = [1, 1]} : vector<16x128xf32> to vector<16x8xf32>
    %14 = vector.shape_cast %13 : vector<16x8xf32> to vector<2x8x8xf32>
    %15 = vector.extract_strided_slice %10 {offsets = [0, 16], sizes = [16, 8], strides = [1, 1]} : vector<16x128xf32> to vector<16x8xf32>
    %16 = vector.shape_cast %15 : vector<16x8xf32> to vector<2x8x8xf32>
    %17 = vector.extract_strided_slice %10 {offsets = [0, 24], sizes = [16, 8], strides = [1, 1]} : vector<16x128xf32> to vector<16x8xf32>
    %18 = vector.shape_cast %17 : vector<16x8xf32> to vector<2x8x8xf32>
    %19 = tpu.concatenate %12, %14, %16, %18 in 0 : vector<2x8x8xf32>, vector<2x8x8xf32>, vector<2x8x8xf32>, vector<2x8x8xf32> -> vector<8x8x8xf32>
    %20 = vector.extract_strided_slice %10 {offsets = [0, 32], sizes = [16, 8], strides = [1, 1]} : vector<16x128xf32> to vector<16x8xf32>
    %21 = vector.shape_cast %20 : vector<16x8xf32> to vector<2x8x8xf32>
    %22 = vector.extract_strided_slice %10 {offsets = [0, 40], sizes = [16, 8], strides = [1, 1]} : vector<16x128xf32> to vector<16x8xf32>
    %23 = vector.shape_cast %22 : vector<16x8xf32> to vector<2x8x8xf32>
    %24 = vector.extract_strided_slice %10 {offsets = [0, 48], sizes = [16, 8], strides = [1, 1]} : vector<16x128xf32> to vector<16x8xf32>
    %25 = vector.shape_cast %24 : vector<16x8xf32> to vector<2x8x8xf32>
    %26 = vector.extract_strided_slice %10 {offsets = [0, 56], sizes = [16, 8], strides = [1, 1]} : vector<16x128xf32> to vector<16x8xf32>
    %27 = vector.shape_cast %26 : vector<16x8xf32> to vector<2x8x8xf32>
    %28 = tpu.concatenate %21, %23, %25, %27 in 0 : vector<2x8x8xf32>, vector<2x8x8xf32>, vector<2x8x8xf32>, vector<2x8x8xf32> -> vector<8x8x8xf32>
    %29 = vector.extract_strided_slice %10 {offsets = [0, 64], sizes = [16, 8], strides = [1, 1]} : vector<16x128xf32> to vector<16x8xf32>
    %30 = vector.shape_cast %29 : vector<16x8xf32> to vector<2x8x8xf32>
    %31 = vector.extract_strided_slice %10 {offsets = [0, 72], sizes = [16, 8], strides = [1, 1]} : vector<16x128xf32> to vector<16x8xf32>
    %32 = vector.shape_cast %31 : vector<16x8xf32> to vector<2x8x8xf32>
    %33 = vector.extract_strided_slice %10 {offsets = [0, 80], sizes = [16, 8], strides = [1, 1]} : vector<16x128xf32> to vector<16x8xf32>
    %34 = vector.shape_cast %33 : vector<16x8xf32> to vector<2x8x8xf32>
    %35 = vector.extract_strided_slice %10 {offsets = [0, 88], sizes = [16, 8], strides = [1, 1]} : vector<16x128xf32> to vector<16x8xf32>
    %36 = vector.shape_cast %35 : vector<16x8xf32> to vector<2x8x8xf32>
    %37 = tpu.concatenate %30, %32, %34, %36 in 0 : vector<2x8x8xf32>, vector<2x8x8xf32>, vector<2x8x8xf32>, vector<2x8x8xf32> -> vector<8x8x8xf32>
    %38 = vector.extract_strided_slice %10 {offsets = [0, 96], sizes = [16, 8], strides = [1, 1]} : vector<16x128xf32> to vector<16x8xf32>
    %39 = vector.shape_cast %38 : vector<16x8xf32> to vector<2x8x8xf32>
    %40 = vector.extract_strided_slice %10 {offsets = [0, 104], sizes = [16, 8], strides = [1, 1]} : vector<16x128xf32> to vector<16x8xf32>
    %41 = vector.shape_cast %40 : vector<16x8xf32> to vector<2x8x8xf32>
    %42 = vector.extract_strided_slice %10 {offsets = [0, 112], sizes = [16, 8], strides = [1, 1]} : vector<16x128xf32> to vector<16x8xf32>
    %43 = vector.shape_cast %42 : vector<16x8xf32> to vector<2x8x8xf32>
    %44 = vector.extract_strided_slice %10 {offsets = [0, 120], sizes = [16, 8], strides = [1, 1]} : vector<16x128xf32> to vector<16x8xf32>
    %45 = vector.shape_cast %44 : vector<16x8xf32> to vector<2x8x8xf32>
    %46 = tpu.concatenate %39, %41, %43, %45 in 0 : vector<2x8x8xf32>, vector<2x8x8xf32>, vector<2x8x8xf32>, vector<2x8x8xf32> -> vector<8x8x8xf32>
    "tpu.trace_start"() <{level = 10 : i32, message = "gid,gjd->gij"}> : () -> ()
    %cst_5 = arith.constant dense<0.000000e+00> : vector<8x8x8xf32>
    %47 = tpu.matmul %19, %28, %cst_5 {dimension_numbers = #tpu.dot_dimension_numbers<[2], [2], [1], [1], [0, 0, 0, 1, 1, 1], [0], [0]>} : vector<8x8x8xf32>, vector<8x8x8xf32>, vector<8x8x8xf32> -> vector<8x8x8xf32>
    "tpu.trace_stop"() : () -> ()
    %cst_6 = arith.constant 0.353553385 : f32
    %48 = vector.broadcast %cst_6 : f32 to vector<8x8x8xf32>
    %49 = arith.mulf %47, %48 : vector<8x8x8xf32>
    %50 = vector.shape_cast %49 : vector<8x8x8xf32> to vector<4x2x8x8xf32>
    %c0_7 = arith.constant 0 : index
    %c0_8 = arith.constant 0 : index
    %c0_9 = arith.constant 0 : index
    %51 = vector.load %arg1[%c0_7, %c0_8, %c0_9] : memref<2x8x8xf32, #tpu.memory_space<vmem>>, vector<2x8x8xf32>
    %cst_10 = arith.constant 0.000000e+00 : f32
    %52 = vector.broadcast %cst_10 : f32 to vector<2x8x8xf32>
    %53 = arith.cmpf oeq, %51, %52 : vector<2x8x8xf32>
    %cst_11 = arith.constant -1.000000e+10 : f32
    %54 = vector.shape_cast %53 : vector<2x8x8xi1> to vector<1x2x8x8xi1>
    %55 = vector.broadcast %54 : vector<1x2x8x8xi1> to vector<4x2x8x8xi1>
    %56 = vector.broadcast %cst_11 : f32 to vector<4x2x8x8xf32>
    %57 = arith.select %55, %56, %50 : vector<4x2x8x8xi1>, vector<4x2x8x8xf32>
    %58 = vector.shape_cast %57 : vector<4x2x8x8xf32> to vector<8x8x8xf32>
    %cst_12 = arith.constant dense<0xFF800000> : vector<8x8xf32>
    %59 = vector.multi_reduction <maximumf>, %58, %cst_12 [2] : vector<8x8x8xf32> to vector<8x8xf32>
    %60 = vector.shape_cast %59 : vector<8x8xf32> to vector<8x8x1xf32>
    %61 = vector.broadcast %60 : vector<8x8x1xf32> to vector<8x8x8xf32>
    %62 = arith.subf %58, %61 : vector<8x8x8xf32>
    %63 = math.exp %62 : vector<8x8x8xf32>
    %cst_13 = arith.constant dense<0.000000e+00> : vector<8x8xf32>
    %64 = vector.multi_reduction <add>, %63, %cst_13 [2] : vector<8x8x8xf32> to vector<8x8xf32>
    %65 = vector.shape_cast %64 : vector<8x8xf32> to vector<8x8x1xf32>
    %66 = tpu.reciprocal %65 {approx = true} : vector<8x8x1xf32> -> vector<8x8x1xf32>
    %67 = vector.broadcast %66 : vector<8x8x1xf32> to vector<8x8x8xf32>
    %68 = arith.mulf %63, %67 : vector<8x8x8xf32>
    "tpu.trace_start"() <{level = 10 : i32, message = "gij,gjd->gid"}> : () -> ()
    %cst_14 = arith.constant dense<0.000000e+00> : vector<8x8x8xf32>
    %69 = tpu.matmul %68, %37, %cst_14 {dimension_numbers = #tpu.dot_dimension_numbers<[2], [1], [1], [2], [0, 0, 0, 1, 1, 2], [0], [0]>} : vector<8x8x8xf32>, vector<8x8x8xf32>, vector<8x8x8xf32> -> vector<8x8x8xf32>
    "tpu.trace_stop"() : () -> ()
    %70 = arith.mulf %69, %46 : vector<8x8x8xf32>
    %71 = vector.extract_strided_slice %70 {offsets = [0, 0, 0], sizes = [2, 8, 8], strides = [1, 1, 1]} : vector<8x8x8xf32> to vector<2x8x8xf32>
    %72 = vector.shape_cast %71 : vector<2x8x8xf32> to vector<16x8xf32>
    %73 = vector.extract_strided_slice %70 {offsets = [2, 0, 0], sizes = [2, 8, 8], strides = [1, 1, 1]} : vector<8x8x8xf32> to vector<2x8x8xf32>
    %74 = vector.shape_cast %73 : vector<2x8x8xf32> to vector<16x8xf32>
    %75 = vector.extract_strided_slice %70 {offsets = [4, 0, 0], sizes = [2, 8, 8], strides = [1, 1, 1]} : vector<8x8x8xf32> to vector<2x8x8xf32>
    %76 = vector.shape_cast %75 : vector<2x8x8xf32> to vector<16x8xf32>
    %77 = vector.extract_strided_slice %70 {offsets = [6, 0, 0], sizes = [2, 8, 8], strides = [1, 1, 1]} : vector<8x8x8xf32> to vector<2x8x8xf32>
    %78 = vector.shape_cast %77 : vector<2x8x8xf32> to vector<16x8xf32>
    %79 = tpu.concatenate %72, %74, %76, %78 in 1 : vector<16x8xf32>, vector<16x8xf32>, vector<16x8xf32>, vector<16x8xf32> -> vector<16x32xf32>
    %cst_15 = arith.constant dense<0.000000e+00> : vector<16x32xf32>
    %80 = tpu.matmul %79, %2, %cst_15 {dimension_numbers = #tpu.dot_dimension_numbers<[1], [0], [0], [1], [0, 0, 1, 1], [], []>} : vector<16x32xf32>, vector<32x32xf32>, vector<16x32xf32> -> vector<16x32xf32>
    %81 = vector.shape_cast %6 : vector<32xf32> to vector<1x32xf32>
    %82 = vector.broadcast %81 : vector<1x32xf32> to vector<16x32xf32>
    %83 = arith.addf %80, %82 : vector<16x32xf32>
    %c0_16 = arith.constant 0 : index
    %c0_17 = arith.constant 0 : index
    %84 = vector.load %arg3[%c0_16, %c0_17] : memref<16x32xf32, #tpu.memory_space<vmem>>, vector<16x32xf32>
    tpu.vector_store %arg3[%c0_16, %c0_17], %83 {strides = array<i32>} : memref<16x32xf32, #tpu.memory_space<vmem>>, vector<16x32xf32>,
    return
  }
}

</mosaic_0001>

<llo_original>
// kernel: self_attention.1
$region0: #{self_attention.1}
  #allocation0 [shape = 'u32[]', space=smem, size = 0x4, offset = 0x4, fixed_abs, tag = 'smem constant byte address 0x4 - core index']
  #allocation1 [shape = 'u32[144,128]{1,0:T(1,128)}', space=vmem, size = 0x12000, scoped, tag = 'internal scratch']
  %s0 = inlined_call_operand.hbm [shape: f32[16,32], index: 0, kind: input, shape index: {}]
  %s1 = inlined_call_operand.hbm [shape: f32[2,8,8], index: 1, kind: input, shape index: {}]
  %s2 = inlined_call_operand.hbm [shape: f32[33,256], index: 2, kind: input, shape index: {}]
  %s3 = inlined_call_operand.hbm [shape: f32[16,32], index: 3, kind: output, shape index: {}]
  %s4 = sld [smem:[#allocation0]]
  $region34: #{self_attention.1} parent=0
    _
  %s6 = ssub.s32 1, %s4
  %s7 = scalar_select 0, %s6, %s4
  $region1: #{self_attention.1} parent=0
    #allocation2 [shape = 'u8[8192]{0}', space=vmem, size = 0x2000, scoped, tag = 'input window, operand 0, single buffered']
    #allocation3 [shape = 's32[1]{0}', space=sflag, size = 0x4, scoped, tag = 'scoped memory for self_attention.1']
    #allocation4 [shape = 's32[1]{0}', space=sflag, size = 0x4, scoped, tag = 'scoped memory for self_attention.1']
    #allocation5 [shape = 'u8[8192]{0}', space=vmem, size = 0x2000, scoped, tag = 'input window, operand 1, single buffered']
    #allocation6 [shape = 's32[1]{0}', space=sflag, size = 0x4, scoped, tag = 'scoped memory for self_attention.1']
    #allocation7 [shape = 'u8[40960]{0}', space=vmem, size = 0xa000, scoped, tag = 'input window, operand 2, single buffered']
    #allocation8 [shape = 'u8[8192]{0}', space=vmem, size = 0x2000, scoped, tag = 'output window, operand 0, single buffered']
    %8 = vsyncpa [#allocation3], 0
    %9 = vsyncpa [#allocation6], 0
    %10 = vsyncpa [#allocation4], 0
    // Predicated region
    $region2: #{self_attention.1} parent=1 // pred_check
      _
    $region3: #{self_attention.1} parent=1 // pred_check_branch
      %12 = sbr.rel (0) target = $region5
    $region4: #{self_attention.1} parent=1 // pred_region
      %s14 = ssub.s32 256, 256
      %15 = vsyncadd [#allocation3], %s14
      %s16 = sshll.u32 [#allocation2], 4
      %s17 = int_to_ptr.vmem [resolvable:$true] %s16
      %22 = dma.hbm_to_vmem [thread:$0]  %s0, 256, %s17, [#allocation3], 128, 128, 8
    $region5: #{self_attention.1} parent=1 // pred_fallthru
      _
    // Predicated region
    $region6: #{self_attention.1} parent=1 // pred_check
      _
    $region7: #{self_attention.1} parent=1 // pred_check_branch
      %24 = sbr.rel (0) target = $region9
    $region8: #{self_attention.1} parent=1 // pred_region
      %s26 = ssub.s32 256, 256
      %27 = vsyncadd [#allocation6], %s26
      %s28 = sshll.u32 [#allocation5], 4
      %s29 = int_to_ptr.vmem [resolvable:$true] %s28
      %34 = dma.hbm_to_vmem [thread:$0]  %s1, 256, %s29, [#allocation6], 128, 128, 8
    $region9: #{self_attention.1} parent=1 // pred_fallthru
      _
    // Predicated region
    $region10: #{self_attention.1} parent=1 // pred_check
      _
    $region11: #{self_attention.1} parent=1 // pred_check_branch
      %36 = sbr.rel (0) target = $region13
    $region12: #{self_attention.1} parent=1 // pred_region
      %s38 = ssub.s32 1280, 1280
      %39 = vsyncadd [#allocation6], %s38
      %s40 = sshll.u32 [#allocation7], 4
      %s41 = int_to_ptr.vmem [resolvable:$true] %s40
      %46 = dma.hbm_to_vmem [thread:$0]  %s2, 1280, %s41, [#allocation6], 256, 256, 16
    $region13: #{self_attention.1} parent=1 // pred_fallthru
      _
    // Predicated region
    $region14: #{self_attention.1} parent=1 // pred_check
      _
    $region15: #{self_attention.1} parent=1 // pred_check_branch
      %48 = sbr.rel (0) target = $region17
    $region16: #{self_attention.1} parent=1 // pred_region
      %49 = dma.done [#allocation3], 256
    $region17: #{self_attention.1} parent=1 // pred_fallthru
      _
    // Predicated region
    $region18: #{self_attention.1} parent=1 // pred_check
      _
    $region19: #{self_attention.1} parent=1 // pred_check_branch
      %51 = sbr.rel (0) target = $region21
    $region20: #{self_attention.1} parent=1 // pred_region
      %52 = dma.done [#allocation6], 256
    $region21: #{self_attention.1} parent=1 // pred_fallthru
      _
    // Predicated region
    $region22: #{self_attention.1} parent=1 // pred_check
      _
    $region23: #{self_attention.1} parent=1 // pred_check_branch
      %54 = sbr.rel (0) target = $region25
    $region24: #{self_attention.1} parent=1 // pred_region
      %55 = dma.done [#allocation6], 1280
    $region25: #{self_attention.1} parent=1 // pred_fallthru
      _
    %v56 = vld [vmem:[#allocation2] sm:$0xff]
    %v57 = vld [vmem:[#allocation2 + $0x8] sm:$0xff]
    %v58 = vld [vmem:[#allocation7] sm:$0xff]
    %v59 = vld [vmem:[#allocation7 + $0x10] sm:$0xff]
    %v60 = vld [vmem:[#allocation7 + $0x20] sm:$0xff]
    %v61 = vld [vmem:[#allocation7 + $0x30] sm:$0xff]
    %v62 = vld [vmem:[#allocation7 + $0x8] sm:$0xff]
    %v63 = vld [vmem:[#allocation7 + $0x18] sm:$0xff]
    %v64 = vld [vmem:[#allocation7 + $0x28] sm:$0xff]
    %v65 = vld [vmem:[#allocation7 + $0x38] sm:$0xff]
    %s66 = scalar_lea.vmem [#allocation7], 64
    %v67 = vld [vmem:[%s66] ss:$8 sm:$0x3]
    %v69 = vlaneseq
    %v70 = vshrl.u32 %v69, 7
    %v71 = vsub.s32 0, %v70
    %v72 = vrot.slane %v67, %v71
    %vm74 = vcmask 261120
    %v76 = vsel %vm74, %v56, 0
    %v79 = vsel %vm74, %v57, 0
    %81 = vmatprep.subr.mxu0 0.0
    %82 = vmatpush1.msra.mxu0 %v58
    %83 = vmatprep.subr.mxu0 0.0
    %84 = vmatpush1.msra.mxu0 %v59
    %85 = vmatprep.subr.mxu0 0.0
    %86 = vmatpush1.msra.mxu0 %v60
    %87 = vmatprep.subr.mxu0 0.0
    %88 = vmatpush1.msra.mxu0 %v61
    %89 = vmatprep.subr.mxu0 0.0
    %90 = vmatpush1.msra.mxu0 0.0
    %91 = vmatprep.subr.mxu0 0.0
    %92 = vmatpush1.msra.mxu0 0.0
    %93 = vmatprep.subr.mxu0 0.0
    %94 = vmatpush1.msra.mxu0 0.0
    %95 = vmatprep.subr.mxu0 0.0
    %96 = vmatpush1.msra.mxu0 0.0
    %97 = vmatprep.subr.mxu0 0.0
    %98 = vmatpush1.msra.mxu0 0.0
    %99 = vmatprep.subr.mxu0 0.0
    %100 = vmatpush1.msra.mxu0 0.0
    %101 = vmatprep.subr.mxu0 0.0
    %102 = vmatpush1.msra.mxu0 0.0
    %103 = vmatprep.subr.mxu0 0.0
    %104 = vmatpush1.msra.mxu0 0.0
    %105 = vmatprep.subr.mxu0 0.0
    %106 = vmatpush1.msra.mxu0 0.0
    %107 = vmatprep.subr.mxu0 0.0
    %108 = vmatpush1.msra.mxu0 0.0
    %109 = vmatprep.subr.mxu0 0.0
    %110 = vmatpush1.msra.mxu0 0.0
    %111 = vmatprep.subr.mxu0 0.0
    %112 = vmatpush1.msra.mxu0 0.0
    %113 = vmatprep.subr.mxu0 0.0
    %114 = vmatpush1.msra.mxu0 0.0
    %115 = vmatprep.subr.mxu0 0.0
    %116 = vmatpush1.msra.mxu0 0.0
    %117 = vmatprep.subr.mxu0 0.0
    %118 = vmatpush1.msra.mxu0 0.0
    %119 = vmatprep.subr.mxu0 0.0
    %120 = vmatpush1.msra.mxu0 0.0
    %121 = vmatprep.subr.mxu0 0.0
    %122 = vmatpush1.msra.mxu0 0.0
    %123 = vmatprep.subr.mxu0 0.0
    %124 = vmatpush1.msra.mxu0 0.0
    %125 = vmatprep.subr.mxu0 0.0
    %126 = vmatpush1.msra.mxu0 0.0
    %127 = vmatprep.subr.mxu0 0.0
    %128 = vmatpush1.msra.mxu0 0.0
    %129 = vmatprep.subr.mxu0 0.0
    %130 = vmatpush1.msra.mxu0 0.0
    %131 = vmatprep.subr.mxu0 0.0
    %132 = vmatpush1.msra.mxu0 0.0
    %133 = vmatprep.subr.mxu0 0.0
    %134 = vmatpush1.msra.mxu0 0.0
    %135 = vmatprep.subr.mxu0 0.0
    %136 = vmatpush1.msra.mxu0 0.0
    %137 = vmatprep.subr.mxu0 0.0
    %138 = vmatpush1.msra.mxu0 0.0
    %139 = vmatprep.subr.mxu0 0.0
    %140 = vmatpush1.msra.mxu0 0.0
    %141 = vmatprep.subr.mxu0 0.0
    %142 = vmatpush1.msra.mxu0 0.0
    %143 = vmatprep.subr.mxu0 0.0
    %144 = vmatpush1.msra.mxu0 0.0
    %145 = vmatprep.mubr.f32.mxu0 0.0
    %146 = vmatmul.mubr.f32.gmra.mrb[0].mxu0 %v76
    %v147 = vpop.f32.mrb[0].mxu0
    %v148 = vadd.f32 %v72, %v147
    %v149 = vpop.f32.mrb[0].mxu0
    %150 = vmatprep.mubr.f32.mxu0 0.0
    %151 = vmatmul.mubr.f32.gmra.mrb[0].mxu0 %v79
    %v152 = vpop.f32.mrb[0].mxu0
    %v153 = vadd.f32 %v72, %v152
    %v154 = vpop.f32.mrb[0].mxu0
    %155 = vdwg.mxu0
    %158 = vrot.lane.b32.xlu0 %v148, 120
    %v159 = vpop.permute.xlu0 %158
    %160 = vrot.lane.b32.xlu0 %v153, 120
    %v161 = vpop.permute.xlu0 %160
    %162 = vrot.lane.b32.xlu0 %v148, 112
    %v163 = vpop.permute.xlu0 %162
    %164 = vrot.lane.b32.xlu0 %v153, 112
    %v165 = vpop.permute.xlu0 %164
    %166 = vrot.lane.b32.xlu0 %v148, 104
    %v167 = vpop.permute.xlu0 %166
    %168 = vrot.lane.b32.xlu0 %v153, 104
    %v169 = vpop.permute.xlu0 %168
    %170 = vrot.lane.b32.xlu0 %v148, 96
    %v171 = vpop.permute.xlu0 %170
    %vm172 = vcmask 64512
    %v173 = vsel %vm172, %v148, 0
    %v175 = vsel %vm172, %v171, 0
    %177 = vmatprep.subr.mxu0 0.0
    %178 = vmatpush1.xpose.msra.mxu0 %v175
    %179 = vmatprep.subr.mxu0 0.0
    %180 = vmatpush1.xpose.msra.mxu0 0.0
    %181 = vmatprep.subr.mxu0 0.0
    %182 = vmatpush1.xpose.msra.mxu0 0.0
    %183 = vmatprep.subr.mxu0 0.0
    %184 = vmatpush1.xpose.msra.mxu0 0.0
    %185 = vmatprep.subr.mxu0 0.0
    %186 = vmatpush1.xpose.msra.mxu0 0.0
    %187 = vmatprep.subr.mxu0 0.0
    %188 = vmatpush1.xpose.msra.mxu0 0.0
    %189 = vmatprep.subr.mxu0 0.0
    %190 = vmatpush1.xpose.msra.mxu0 0.0
    %191 = vmatprep.subr.mxu0 0.0
    %192 = vmatpush1.xpose.msra.mxu0 0.0
    %193 = vmatprep.subr.mxu0 0.0
    %194 = vmatpush1.xpose.msra.mxu0 0.0
    %195 = vmatprep.subr.mxu0 0.0
    %196 = vmatpush1.xpose.msra.mxu0 0.0
    %197 = vmatprep.subr.mxu0 0.0
    %198 = vmatpush1.xpose.msra.mxu0 0.0
    %199 = vmatprep.subr.mxu0 0.0
    %200 = vmatpush1.xpose.msra.mxu0 0.0
    %201 = vmatprep.subr.mxu0 0.0
    %202 = vmatpush1.xpose.msra.mxu0 0.0
    %203 = vmatprep.subr.mxu0 0.0
    %204 = vmatpush1.xpose.msra.mxu0 0.0
    %205 = vmatprep.subr.mxu0 0.0
    %206 = vmatpush1.xpose.msra.mxu0 0.0
    %207 = vmatprep.subr.mxu0 0.0
    %208 = vmatpush1.xpose.msra.mxu0 0.0
    %209 = vmatprep.subr.mxu0 0.0
    %210 = vmatpush1.xpose.msra.mxu0 0.0
    %211 = vmatprep.subr.mxu0 0.0
    %212 = vmatpush1.xpose.msra.mxu0 0.0
    %213 = vmatprep.subr.mxu0 0.0
    %214 = vmatpush1.xpose.msra.mxu0 0.0
    %215 = vmatprep.subr.mxu0 0.0
    %216 = vmatpush1.xpose.msra.mxu0 0.0
    %217 = vmatprep.subr.mxu0 0.0
    %218 = vmatpush1.xpose.msra.mxu0 0.0
    %219 = vmatprep.subr.mxu0 0.0
    %220 = vmatpush1.xpose.msra.mxu0 0.0
    %221 = vmatprep.subr.mxu0 0.0
    %222 = vmatpush1.xpose.msra.mxu0 0.0
    %223 = vmatprep.subr.mxu0 0.0
    %224 = vmatpush1.xpose.msra.mxu0 0.0
    %225 = vmatprep.subr.mxu0 0.0
    %226 = vmatpush1.xpose.msra.mxu0 0.0
    %227 = vmatprep.subr.mxu0 0.0
    %228 = vmatpush1.xpose.msra.mxu0 0.0
    %229 = vmatprep.subr.mxu0 0.0
    %230 = vmatpush1.xpose.msra.mxu0 0.0
    %231 = vmatprep.subr.mxu0 0.0
    %232 = vmatpush1.xpose.msra.mxu0 0.0
    %233 = vmatprep.subr.mxu0 0.0
    %234 = vmatpush1.xpose.msra.mxu0 0.0
    %235 = vmatprep.subr.mxu0 0.0
    %236 = vmatpush1.xpose.msra.mxu0 0.0
    %237 = vmatprep.subr.mxu0 0.0
    %238 = vmatpush1.xpose.msra.mxu0 0.0
    %239 = vmatprep.subr.mxu0 0.0
    %240 = vmatpush1.xpose.msra.mxu0 0.0
    %241 = vmatprep.mubr.f32.mxu0 0.0
    %242 = vmatmul.mubr.f32.gmra.mrb[0].mxu0 %v173
    %v243 = vpop.f32.mrb[0].mxu0
    %v244 = vadd.f32 0.0, %v243
    %v245 = vpop.f32.mrb[0].mxu0
    %246 = vdwg.mxu0
    %247 = vrot.lane.b32.xlu0 %v153, 96
    %v248 = vpop.permute.xlu0 %247
    %v249 = vsel %vm172, %v153, 0
    %v251 = vsel %vm172, %v248, 0
    %253 = vmatprep.subr.mxu0 0.0
    %254 = vmatpush1.xpose.msra.mxu0 %v251
    %255 = vmatprep.subr.mxu0 0.0
    %256 = vmatpush1.xpose.msra.mxu0 0.0
    %257 = vmatprep.subr.mxu0 0.0
    %258 = vmatpush1.xpose.msra.mxu0 0.0
    %259 = vmatprep.subr.mxu0 0.0
    %260 = vmatpush1.xpose.msra.mxu0 0.0
    %261 = vmatprep.subr.mxu0 0.0
    %262 = vmatpush1.xpose.msra.mxu0 0.0
    %263 = vmatprep.subr.mxu0 0.0
    %264 = vmatpush1.xpose.msra.mxu0 0.0
    %265 = vmatprep.subr.mxu0 0.0
    %266 = vmatpush1.xpose.msra.mxu0 0.0
    %267 = vmatprep.subr.mxu0 0.0
    %268 = vmatpush1.xpose.msra.mxu0 0.0
    %269 = vmatprep.subr.mxu0 0.0
    %270 = vmatpush1.xpose.msra.mxu0 0.0
    %271 = vmatprep.subr.mxu0 0.0
    %272 = vmatpush1.xpose.msra.mxu0 0.0
    %273 = vmatprep.subr.mxu0 0.0
    %274 = vmatpush1.xpose.msra.mxu0 0.0
    %275 = vmatprep.subr.mxu0 0.0
    %276 = vmatpush1.xpose.msra.mxu0 0.0
    %277 = vmatprep.subr.mxu0 0.0
    %278 = vmatpush1.xpose.msra.mxu0 0.0
    %279 = vmatprep.subr.mxu0 0.0
    %280 = vmatpush1.xpose.msra.mxu0 0.0
    %281 = vmatprep.subr.mxu0 0.0
    %282 = vmatpush1.xpose.msra.mxu0 0.0
    %283 = vmatprep.subr.mxu0 0.0
    %284 = vmatpush1.xpose.msra.mxu0 0.0
    %285 = vmatprep.subr.mxu0 0.0
    %286 = vmatpush1.xpose.msra.mxu0 0.0
    %287 = vmatprep.subr.mxu0 0.0
    %288 = vmatpush1.xpose.msra.mxu0 0.0
    %289 = vmatprep.subr.mxu0 0.0
    %290 = vmatpush1.xpose.msra.mxu0 0.0
    %291 = vmatprep.subr.mxu0 0.0
    %292 = vmatpush1.xpose.msra.mxu0 0.0
    %293 = vmatprep.subr.mxu0 0.0
    %294 = vmatpush1.xpose.msra.mxu0 0.0
    %295 = vmatprep.subr.mxu0 0.0
    %296 = vmatpush1.xpose.msra.mxu0 0.0
    %297 = vmatprep.subr.mxu0 0.0
    %298 = vmatpush1.xpose.msra.mxu0 0.0
    %299 = vmatprep.subr.mxu0 0.0
    %300 = vmatpush1.xpose.msra.mxu0 0.0
    %301 = vmatprep.subr.mxu0 0.0
    %302 = vmatpush1.xpose.msra.mxu0 0.0
    %303 = vmatprep.subr.mxu0 0.0
    %304 = vmatpush1.xpose.msra.mxu0 0.0
    %305 = vmatprep.subr.mxu0 0.0
    %306 = vmatpush1.xpose.msra.mxu0 0.0
    %307 = vmatprep.subr.mxu0 0.0
    %308 = vmatpush1.xpose.msra.mxu0 0.0
    %309 = vmatprep.subr.mxu0 0.0
    %310 = vmatpush1.xpose.msra.mxu0 0.0
    %311 = vmatprep.subr.mxu0 0.0
    %312 = vmatpush1.xpose.msra.mxu0 0.0
    %313 = vmatprep.subr.mxu0 0.0
    %314 = vmatpush1.xpose.msra.mxu0 0.0
    %315 = vmatprep.subr.mxu0 0.0
    %316 = vmatpush1.xpose.msra.mxu0 0.0
    %317 = vmatprep.mubr.f32.mxu0 0.0
    %318 = vmatmul.mubr.f32.gmra.mrb[0].mxu0 %v249
    %v319 = vpop.f32.mrb[0].mxu0
    %v320 = vadd.f32 0.0, %v319
    %v321 = vpop.f32.mrb[0].mxu0
    %322 = vdwg.mxu0
    %323 = vrot.lane.b32.xlu0 %v159, 96
    %v324 = vpop.permute.xlu0 %323
    %v325 = vsel %vm172, %v159, 0
    %v327 = vsel %vm172, %v324, 0
    %329 = vmatprep.subr.mxu0 0.0
    %330 = vmatpush1.xpose.msra.mxu0 %v327
    %331 = vmatprep.subr.mxu0 0.0
    %332 = vmatpush1.xpose.msra.mxu0 0.0
    %333 = vmatprep.subr.mxu0 0.0
    %334 = vmatpush1.xpose.msra.mxu0 0.0
    %335 = vmatprep.subr.mxu0 0.0
    %336 = vmatpush1.xpose.msra.mxu0 0.0
    %337 = vmatprep.subr.mxu0 0.0
    %338 = vmatpush1.xpose.msra.mxu0 0.0
    %339 = vmatprep.subr.mxu0 0.0
    %340 = vmatpush1.xpose.msra.mxu0 0.0
    %341 = vmatprep.subr.mxu0 0.0
    %342 = vmatpush1.xpose.msra.mxu0 0.0
    %343 = vmatprep.subr.mxu0 0.0
    %344 = vmatpush1.xpose.msra.mxu0 0.0
    %345 = vmatprep.subr.mxu0 0.0
    %346 = vmatpush1.xpose.msra.mxu0 0.0
    %347 = vmatprep.subr.mxu0 0.0
    %348 = vmatpush1.xpose.msra.mxu0 0.0
    %349 = vmatprep.subr.mxu0 0.0
    %350 = vmatpush1.xpose.msra.mxu0 0.0
    %351 = vmatprep.subr.mxu0 0.0
    %352 = vmatpush1.xpose.msra.mxu0 0.0
    %353 = vmatprep.subr.mxu0 0.0
    %354 = vmatpush1.xpose.msra.mxu0 0.0
    %355 = vmatprep.subr.mxu0 0.0
    %356 = vmatpush1.xpose.msra.mxu0 0.0
    %357 = vmatprep.subr.mxu0 0.0
    %358 = vmatpush1.xpose.msra.mxu0 0.0
    %359 = vmatprep.subr.mxu0 0.0
    %360 = vmatpush1.xpose.msra.mxu0 0.0
    %361 = vmatprep.subr.mxu0 0.0
    %362 = vmatpush1.xpose.msra.mxu0 0.0
    %363 = vmatprep.subr.mxu0 0.0
    %364 = vmatpush1.xpose.msra.mxu0 0.0
    %365 = vmatprep.subr.mxu0 0.0
    %366 = vmatpush1.xpose.msra.mxu0 0.0
    %367 = vmatprep.subr.mxu0 0.0
    %368 = vmatpush1.xpose.msra.mxu0 0.0
    %369 = vmatprep.subr.mxu0 0.0
    %370 = vmatpush1.xpose.msra.mxu0 0.0
    %371 = vmatprep.subr.mxu0 0.0
    %372 = vmatpush1.xpose.msra.mxu0 0.0
    %373 = vmatprep.subr.mxu0 0.0
    %374 = vmatpush1.xpose.msra.mxu0 0.0
    %375 = vmatprep.subr.mxu0 0.0
    %376 = vmatpush1.xpose.msra.mxu0 0.0
    %377 = vmatprep.subr.mxu0 0.0
    %378 = vmatpush1.xpose.msra.mxu0 0.0
    %379 = vmatprep.subr.mxu0 0.0
    %380 = vmatpush1.xpose.msra.mxu0 0.0
    %381 = vmatprep.subr.mxu0 0.0
    %382 = vmatpush1.xpose.msra.mxu0 0.0
    %383 = vmatprep.subr.mxu0 0.0
    %384 = vmatpush1.xpose.msra.mxu0 0.0
    %385 = vmatprep.subr.mxu0 0.0
    %386 = vmatpush1.xpose.msra.mxu0 0.0
    %387 = vmatprep.subr.mxu0 0.0
    %388 = vmatpush1.xpose.msra.mxu0 0.0
    %389 = vmatprep.subr.mxu0 0.0
    %390 = vmatpush1.xpose.msra.mxu0 0.0
    %391 = vmatprep.subr.mxu0 0.0
    %392 = vmatpush1.xpose.msra.mxu0 0.0
    %393 = vmatprep.mubr.f32.mxu0 0.0
    %394 = vmatmul.mubr.f32.gmra.mrb[0].mxu0 %v325
    %v395 = vpop.f32.mrb[0].mxu0
    %v396 = vadd.f32 0.0, %v395
    %v397 = vpop.f32.mrb[0].mxu0
    %398 = vdwg.mxu0
    %399 = vrot.lane.b32.xlu0 %v161, 96
    %v400 = vpop.permute.xlu0 %399
    %v401 = vsel %vm172, %v161, 0
    %v403 = vsel %vm172, %v400, 0
    %405 = vmatprep.subr.mxu0 0.0
    %406 = vmatpush1.xpose.msra.mxu0 %v403
    %407 = vmatprep.subr.mxu0 0.0
    %408 = vmatpush1.xpose.msra.mxu0 0.0
    %409 = vmatprep.subr.mxu0 0.0
    %410 = vmatpush1.xpose.msra.mxu0 0.0
    %411 = vmatprep.subr.mxu0 0.0
    %412 = vmatpush1.xpose.msra.mxu0 0.0
    %413 = vmatprep.subr.mxu0 0.0
    %414 = vmatpush1.xpose.msra.mxu0 0.0
    %415 = vmatprep.subr.mxu0 0.0
    %416 = vmatpush1.xpose.msra.mxu0 0.0
    %417 = vmatprep.subr.mxu0 0.0
    %418 = vmatpush1.xpose.msra.mxu0 0.0
    %419 = vmatprep.subr.mxu0 0.0
    %420 = vmatpush1.xpose.msra.mxu0 0.0
    %421 = vmatprep.subr.mxu0 0.0
    %422 = vmatpush1.xpose.msra.mxu0 0.0
    %423 = vmatprep.subr.mxu0 0.0
    %424 = vmatpush1.xpose.msra.mxu0 0.0
    %425 = vmatprep.subr.mxu0 0.0
    %426 = vmatpush1.xpose.msra.mxu0 0.0
    %427 = vmatprep.subr.mxu0 0.0
    %428 = vmatpush1.xpose.msra.mxu0 0.0
    %429 = vmatprep.subr.mxu0 0.0
    %430 = vmatpush1.xpose.msra.mxu0 0.0
    %431 = vmatprep.subr.mxu0 0.0
    %432 = vmatpush1.xpose.msra.mxu0 0.0
    %433 = vmatprep.subr.mxu0 0.0
    %434 = vmatpush1.xpose.msra.mxu0 0.0
    %435 = vmatprep.subr.mxu0 0.0
    %436 = vmatpush1.xpose.msra.mxu0 0.0
    %437 = vmatprep.subr.mxu0 0.0
    %438 = vmatpush1.xpose.msra.mxu0 0.0
    %439 = vmatprep.subr.mxu0 0.0
    %440 = vmatpush1.xpose.msra.mxu0 0.0
    %441 = vmatprep.subr.mxu0 0.0
    %442 = vmatpush1.xpose.msra.mxu0 0.0
    %443 = vmatprep.subr.mxu0 0.0
    %444 = vmatpush1.xpose.msra.mxu0 0.0
    %445 = vmatprep.subr.mxu0 0.0
    %446 = vmatpush1.xpose.msra.mxu0 0.0
    %447 = vmatprep.subr.mxu0 0.0
    %448 = vmatpush1.xpose.msra.mxu0 0.0
    %449 = vmatprep.subr.mxu0 0.0
    %450 = vmatpush1.xpose.msra.mxu0 0.0
    %451 = vmatprep.subr.mxu0 0.0
    %452 = vmatpush1.xpose.msra.mxu0 0.0
    %453 = vmatprep.subr.mxu0 0.0
    %454 = vmatpush1.xpose.msra.mxu0 0.0
    %455 = vmatprep.subr.mxu0 0.0
    %456 = vmatpush1.xpose.msra.mxu0 0.0
    %457 = vmatprep.subr.mxu0 0.0
    %458 = vmatpush1.xpose.msra.mxu0 0.0
    %459 = vmatprep.subr.mxu0 0.0
    %460 = vmatpush1.xpose.msra.mxu0 0.0
    %461 = vmatprep.subr.mxu0 0.0
    %462 = vmatpush1.xpose.msra.mxu0 0.0
    %463 = vmatprep.subr.mxu0 0.0
    %464 = vmatpush1.xpose.msra.mxu0 0.0
    %465 = vmatprep.subr.mxu0 0.0
    %466 = vmatpush1.xpose.msra.mxu0 0.0
    %467 = vmatprep.subr.mxu0 0.0
    %468 = vmatpush1.xpose.msra.mxu0 0.0
    %469 = vmatprep.mubr.f32.mxu0 0.0
    %470 = vmatmul.mubr.f32.gmra.mrb[0].mxu0 %v401
    %v471 = vpop.f32.mrb[0].mxu0
    %v472 = vadd.f32 0.0, %v471
    %v473 = vpop.f32.mrb[0].mxu0
    %474 = vdwg.mxu0
    %475 = vrot.lane.b32.xlu0 %v163, 96
    %v476 = vpop.permute.xlu0 %475
    %v477 = vsel %vm172, %v163, 0
    %v479 = vsel %vm172, %v476, 0
    %481 = vmatprep.subr.mxu0 0.0
    %482 = vmatpush1.xpose.msra.mxu0 %v479
    %483 = vmatprep.subr.mxu0 0.0
    %484 = vmatpush1.xpose.msra.mxu0 0.0
    %485 = vmatprep.subr.mxu0 0.0
    %486 = vmatpush1.xpose.msra.mxu0 0.0
    %487 = vmatprep.subr.mxu0 0.0
    %488 = vmatpush1.xpose.msra.mxu0 0.0
    %489 = vmatprep.subr.mxu0 0.0
    %490 = vmatpush1.xpose.msra.mxu0 0.0
    %491 = vmatprep.subr.mxu0 0.0
    %492 = vmatpush1.xpose.msra.mxu0 0.0
    %493 = vmatprep.subr.mxu0 0.0
    %494 = vmatpush1.xpose.msra.mxu0 0.0
    %495 = vmatprep.subr.mxu0 0.0
    %496 = vmatpush1.xpose.msra.mxu0 0.0
    %497 = vmatprep.subr.mxu0 0.0
    %498 = vmatpush1.xpose.msra.mxu0 0.0
    %499 = vmatprep.subr.mxu0 0.0
    %500 = vmatpush1.xpose.msra.mxu0 0.0
    %501 = vmatprep.subr.mxu0 0.0
    %502 = vmatpush1.xpose.msra.mxu0 0.0
    %503 = vmatprep.subr.mxu0 0.0
    %504 = vmatpush1.xpose.msra.mxu0 0.0
    %505 = vmatprep.subr.mxu0 0.0
    %506 = vmatpush1.xpose.msra.mxu0 0.0
    %507 = vmatprep.subr.mxu0 0.0
    %508 = vmatpush1.xpose.msra.mxu0 0.0
    %509 = vmatprep.subr.mxu0 0.0
    %510 = vmatpush1.xpose.msra.mxu0 0.0
    %511 = vmatprep.subr.mxu0 0.0
    %512 = vmatpush1.xpose.msra.mxu0 0.0
    %513 = vmatprep.subr.mxu0 0.0
    %514 = vmatpush1.xpose.msra.mxu0 0.0
    %515 = vmatprep.subr.mxu0 0.0
    %516 = vmatpush1.xpose.msra.mxu0 0.0
    %517 = vmatprep.subr.mxu0 0.0
    %518 = vmatpush1.xpose.msra.mxu0 0.0
    %519 = vmatprep.subr.mxu0 0.0
    %520 = vmatpush1.xpose.msra.mxu0 0.0
    %521 = vmatprep.subr.mxu0 0.0
    %522 = vmatpush1.xpose.msra.mxu0 0.0
    %523 = vmatprep.subr.mxu0 0.0
    %524 = vmatpush1.xpose.msra.mxu0 0.0
    %525 = vmatprep.subr.mxu0 0.0
    %526 = vmatpush1.xpose.msra.mxu0 0.0
    %527 = vmatprep.subr.mxu0 0.0
    %528 = vmatpush1.xpose.msra.mxu0 0.0
    %529 = vmatprep.subr.mxu0 0.0
    %530 = vmatpush1.xpose.msra.mxu0 0.0
    %531 = vmatprep.subr.mxu0 0.0
    %532 = vmatpush1.xpose.msra.mxu0 0.0
    %533 = vmatprep.subr.mxu0 0.0
    %534 = vmatpush1.xpose.msra.mxu0 0.0
    %535 = vmatprep.subr.mxu0 0.0
    %536 = vmatpush1.xpose.msra.mxu0 0.0
    %537 = vmatprep.subr.mxu0 0.0
    %538 = vmatpush1.xpose.msra.mxu0 0.0
    %539 = vmatprep.subr.mxu0 0.0
    %540 = vmatpush1.xpose.msra.mxu0 0.0
    %541 = vmatprep.subr.mxu0 0.0
    %542 = vmatpush1.xpose.msra.mxu0 0.0
    %543 = vmatprep.subr.mxu0 0.0
    %544 = vmatpush1.xpose.msra.mxu0 0.0
    %545 = vmatprep.mubr.f32.mxu0 0.0
    %546 = vmatmul.mubr.f32.gmra.mrb[0].mxu0 %v477
    %v547 = vpop.f32.mrb[0].mxu0
    %v548 = vadd.f32 0.0, %v547
    %v549 = vpop.f32.mrb[0].mxu0
    %550 = vdwg.mxu0
    %551 = vrot.lane.b32.xlu0 %v165, 96
    %v552 = vpop.permute.xlu0 %551
    %v553 = vsel %vm172, %v165, 0
    %v555 = vsel %vm172, %v552, 0
    %557 = vmatprep.subr.mxu0 0.0
    %558 = vmatpush1.xpose.msra.mxu0 %v555
    %559 = vmatprep.subr.mxu0 0.0
    %560 = vmatpush1.xpose.msra.mxu0 0.0
    %561 = vmatprep.subr.mxu0 0.0
    %562 = vmatpush1.xpose.msra.mxu0 0.0
    %563 = vmatprep.subr.mxu0 0.0
    %564 = vmatpush1.xpose.msra.mxu0 0.0
    %565 = vmatprep.subr.mxu0 0.0
    %566 = vmatpush1.xpose.msra.mxu0 0.0
    %567 = vmatprep.subr.mxu0 0.0
    %568 = vmatpush1.xpose.msra.mxu0 0.0
    %569 = vmatprep.subr.mxu0 0.0
    %570 = vmatpush1.xpose.msra.mxu0 0.0
    %571 = vmatprep.subr.mxu0 0.0
    %572 = vmatpush1.xpose.msra.mxu0 0.0
    %573 = vmatprep.subr.mxu0 0.0
    %574 = vmatpush1.xpose.msra.mxu0 0.0
    %575 = vmatprep.subr.mxu0 0.0
    %576 = vmatpush1.xpose.msra.mxu0 0.0
    %577 = vmatprep.subr.mxu0 0.0
    %578 = vmatpush1.xpose.msra.mxu0 0.0
    %579 = vmatprep.subr.mxu0 0.0
    %580 = vmatpush1.xpose.msra.mxu0 0.0
    %581 = vmatprep.subr.mxu0 0.0
    %582 = vmatpush1.xpose.msra.mxu0 0.0
    %583 = vmatprep.subr.mxu0 0.0
    %584 = vmatpush1.xpose.msra.mxu0 0.0
    %585 = vmatprep.subr.mxu0 0.0
    %586 = vmatpush1.xpose.msra.mxu0 0.0
    %587 = vmatprep.subr.mxu0 0.0
    %588 = vmatpush1.xpose.msra.mxu0 0.0
    %589 = vmatprep.subr.mxu0 0.0
    %590 = vmatpush1.xpose.msra.mxu0 0.0
    %591 = vmatprep.subr.mxu0 0.0
    %592 = vmatpush1.xpose.msra.mxu0 0.0
    %593 = vmatprep.subr.mxu0 0.0
    %594 = vmatpush1.xpose.msra.mxu0 0.0
    %595 = vmatprep.subr.mxu0 0.0
    %596 = vmatpush1.xpose.msra.mxu0 0.0
    %597 = vmatprep.subr.mxu0 0.0
    %598 = vmatpush1.xpose.msra.mxu0 0.0
    %599 = vmatprep.subr.mxu0 0.0
    %600 = vmatpush1.xpose.msra.mxu0 0.0
    %601 = vmatprep.subr.mxu0 0.0
    %602 = vmatpush1.xpose.msra.mxu0 0.0
    %603 = vmatprep.subr.mxu0 0.0
    %604 = vmatpush1.xpose.msra.mxu0 0.0
    %605 = vmatprep.subr.mxu0 0.0
    %606 = vmatpush1.xpose.msra.mxu0 0.0
    %607 = vmatprep.subr.mxu0 0.0
    %608 = vmatpush1.xpose.msra.mxu0 0.0
    %609 = vmatprep.subr.mxu0 0.0
    %610 = vmatpush1.xpose.msra.mxu0 0.0
    %611 = vmatprep.subr.mxu0 0.0
    %612 = vmatpush1.xpose.msra.mxu0 0.0
    %613 = vmatprep.subr.mxu0 0.0
    %614 = vmatpush1.xpose.msra.mxu0 0.0
    %615 = vmatprep.subr.mxu0 0.0
    %616 = vmatpush1.xpose.msra.mxu0 0.0
    %617 = vmatprep.subr.mxu0 0.0
    %618 = vmatpush1.xpose.msra.mxu0 0.0
    %619 = vmatprep.subr.mxu0 0.0
    %620 = vmatpush1.xpose.msra.mxu0 0.0
    %621 = vmatprep.mubr.f32.mxu0 0.0
    %622 = vmatmul.mubr.f32.gmra.mrb[0].mxu0 %v553
    %v623 = vpop.f32.mrb[0].mxu0
    %v624 = vadd.f32 0.0, %v623
    %v625 = vpop.f32.mrb[0].mxu0
    %626 = vdwg.mxu0
    %627 = vrot.lane.b32.xlu0 %v167, 96
    %v628 = vpop.permute.xlu0 %627
    %v629 = vsel %vm172, %v167, 0
    %v631 = vsel %vm172, %v628, 0
    %633 = vmatprep.subr.mxu0 0.0
    %634 = vmatpush1.xpose.msra.mxu0 %v631
    %635 = vmatprep.subr.mxu0 0.0
    %636 = vmatpush1.xpose.msra.mxu0 0.0
    %637 = vmatprep.subr.mxu0 0.0
    %638 = vmatpush1.xpose.msra.mxu0 0.0
    %639 = vmatprep.subr.mxu0 0.0
    %640 = vmatpush1.xpose.msra.mxu0 0.0
    %641 = vmatprep.subr.mxu0 0.0
    %642 = vmatpush1.xpose.msra.mxu0 0.0
    %643 = vmatprep.subr.mxu0 0.0
    %644 = vmatpush1.xpose.msra.mxu0 0.0
    %645 = vmatprep.subr.mxu0 0.0
    %646 = vmatpush1.xpose.msra.mxu0 0.0
    %647 = vmatprep.subr.mxu0 0.0
    %648 = vmatpush1.xpose.msra.mxu0 0.0
    %649 = vmatprep.subr.mxu0 0.0
    %650 = vmatpush1.xpose.msra.mxu0 0.0
    %651 = vmatprep.subr.mxu0 0.0
    %652 = vmatpush1.xpose.msra.mxu0 0.0
    %653 = vmatprep.subr.mxu0 0.0
    %654 = vmatpush1.xpose.msra.mxu0 0.0
    %655 = vmatprep.subr.mxu0 0.0
    %656 = vmatpush1.xpose.msra.mxu0 0.0
    %657 = vmatprep.subr.mxu0 0.0
    %658 = vmatpush1.xpose.msra.mxu0 0.0
    %659 = vmatprep.subr.mxu0 0.0
    %660 = vmatpush1.xpose.msra.mxu0 0.0
    %661 = vmatprep.subr.mxu0 0.0
    %662 = vmatpush1.xpose.msra.mxu0 0.0
    %663 = vmatprep.subr.mxu0 0.0
    %664 = vmatpush1.xpose.msra.mxu0 0.0
    %665 = vmatprep.subr.mxu0 0.0
    %666 = vmatpush1.xpose.msra.mxu0 0.0
    %667 = vmatprep.subr.mxu0 0.0
    %668 = vmatpush1.xpose.msra.mxu0 0.0
    %669 = vmatprep.subr.mxu0 0.0
    %670 = vmatpush1.xpose.msra.mxu0 0.0
    %671 = vmatprep.subr.mxu0 0.0
    %672 = vmatpush1.xpose.msra.mxu0 0.0
    %673 = vmatprep.subr.mxu0 0.0
    %674 = vmatpush1.xpose.msra.mxu0 0.0
    %675 = vmatprep.subr.mxu0 0.0
    %676 = vmatpush1.xpose.msra.mxu0 0.0
    %677 = vmatprep.subr.mxu0 0.0
    %678 = vmatpush1.xpose.msra.mxu0 0.0
    %679 = vmatprep.subr.mxu0 0.0
    %680 = vmatpush1.xpose.msra.mxu0 0.0
    %681 = vmatprep.subr.mxu0 0.0
    %682 = vmatpush1.xpose.msra.mxu0 0.0
    %683 = vmatprep.subr.mxu0 0.0
    %684 = vmatpush1.xpose.msra.mxu0 0.0
    %685 = vmatprep.subr.mxu0 0.0
    %686 = vmatpush1.xpose.msra.mxu0 0.0
    %687 = vmatprep.subr.mxu0 0.0
    %688 = vmatpush1.xpose.msra.mxu0 0.0
    %689 = vmatprep.subr.mxu0 0.0
    %690 = vmatpush1.xpose.msra.mxu0 0.0
    %691 = vmatprep.subr.mxu0 0.0
    %692 = vmatpush1.xpose.msra.mxu0 0.0
    %693 = vmatprep.subr.mxu0 0.0
    %694 = vmatpush1.xpose.msra.mxu0 0.0
    %695 = vmatprep.subr.mxu0 0.0
    %696 = vmatpush1.xpose.msra.mxu0 0.0
    %697 = vmatprep.mubr.f32.mxu0 0.0
    %698 = vmatmul.mubr.f32.gmra.mrb[0].mxu0 %v629
    %v699 = vpop.f32.mrb[0].mxu0
    %v700 = vadd.f32 0.0, %v699
    %v701 = vpop.f32.mrb[0].mxu0
    %702 = vdwg.mxu0
    %703 = vrot.lane.b32.xlu0 %v169, 96
    %v704 = vpop.permute.xlu0 %703
    %v705 = vsel %vm172, %v169, 0
    %v707 = vsel %vm172, %v704, 0
    %709 = vmatprep.subr.mxu0 0.0
    %710 = vmatpush1.xpose.msra.mxu0 %v707
    %711 = vmatprep.subr.mxu0 0.0
    %712 = vmatpush1.xpose.msra.mxu0 0.0
    %713 = vmatprep.subr.mxu0 0.0
    %714 = vmatpush1.xpose.msra.mxu0 0.0
    %715 = vmatprep.subr.mxu0 0.0
    %716 = vmatpush1.xpose.msra.mxu0 0.0
    %717 = vmatprep.subr.mxu0 0.0
    %718 = vmatpush1.xpose.msra.mxu0 0.0
    %719 = vmatprep.subr.mxu0 0.0
    %720 = vmatpush1.xpose.msra.mxu0 0.0
    %721 = vmatprep.subr.mxu0 0.0
    %722 = vmatpush1.xpose.msra.mxu0 0.0
    %723 = vmatprep.subr.mxu0 0.0
    %724 = vmatpush1.xpose.msra.mxu0 0.0
    %725 = vmatprep.subr.mxu0 0.0
    %726 = vmatpush1.xpose.msra.mxu0 0.0
    %727 = vmatprep.subr.mxu0 0.0
    %728 = vmatpush1.xpose.msra.mxu0 0.0
    %729 = vmatprep.subr.mxu0 0.0
    %730 = vmatpush1.xpose.msra.mxu0 0.0
    %731 = vmatprep.subr.mxu0 0.0
    %732 = vmatpush1.xpose.msra.mxu0 0.0
    %733 = vmatprep.subr.mxu0 0.0
    %734 = vmatpush1.xpose.msra.mxu0 0.0
    %735 = vmatprep.subr.mxu0 0.0
    %736 = vmatpush1.xpose.msra.mxu0 0.0
    %737 = vmatprep.subr.mxu0 0.0
    %738 = vmatpush1.xpose.msra.mxu0 0.0
    %739 = vmatprep.subr.mxu0 0.0
    %740 = vmatpush1.xpose.msra.mxu0 0.0
    %741 = vmatprep.subr.mxu0 0.0
    %742 = vmatpush1.xpose.msra.mxu0 0.0
    %743 = vmatprep.subr.mxu0 0.0
    %744 = vmatpush1.xpose.msra.mxu0 0.0
    %745 = vmatprep.subr.mxu0 0.0
    %746 = vmatpush1.xpose.msra.mxu0 0.0
    %747 = vmatprep.subr.mxu0 0.0
    %748 = vmatpush1.xpose.msra.mxu0 0.0
    %749 = vmatprep.subr.mxu0 0.0
    %750 = vmatpush1.xpose.msra.mxu0 0.0
    %751 = vmatprep.subr.mxu0 0.0
    %752 = vmatpush1.xpose.msra.mxu0 0.0
    %753 = vmatprep.subr.mxu0 0.0
    %754 = vmatpush1.xpose.msra.mxu0 0.0
    %755 = vmatprep.subr.mxu0 0.0
    %756 = vmatpush1.xpose.msra.mxu0 0.0
    %757 = vmatprep.subr.mxu0 0.0
    %758 = vmatpush1.xpose.msra.mxu0 0.0
    %759 = vmatprep.subr.mxu0 0.0
    %760 = vmatpush1.xpose.msra.mxu0 0.0
    %761 = vmatprep.subr.mxu0 0.0
    %762 = vmatpush1.xpose.msra.mxu0 0.0
    %763 = vmatprep.subr.mxu0 0.0
    %764 = vmatpush1.xpose.msra.mxu0 0.0
    %765 = vmatprep.subr.mxu0 0.0
    %766 = vmatpush1.xpose.msra.mxu0 0.0
    %767 = vmatprep.subr.mxu0 0.0
    %768 = vmatpush1.xpose.msra.mxu0 0.0
    %769 = vmatprep.subr.mxu0 0.0
    %770 = vmatpush1.xpose.msra.mxu0 0.0
    %771 = vmatprep.subr.mxu0 0.0
    %772 = vmatpush1.xpose.msra.mxu0 0.0
    %773 = vmatprep.mubr.f32.mxu0 0.0
    %774 = vmatmul.mubr.f32.gmra.mrb[0].mxu0 %v705
    %v775 = vpop.f32.mrb[0].mxu0
    %v776 = vadd.f32 0.0, %v775
    %v777 = vpop.f32.mrb[0].mxu0
    %778 = vdwg.mxu0
    %v779 = vmul.f32 %v244, 0.35355338
    %v780 = vmul.f32 %v320, 0.35355338
    %v781 = vmul.f32 %v396, 0.35355338
    %v782 = vmul.f32 %v472, 0.35355338
    %v783 = vmul.f32 %v548, 0.35355338
    %v784 = vmul.f32 %v624, 0.35355338
    %v785 = vmul.f32 %v700, 0.35355338
    %v786 = vmul.f32 %v776, 0.35355338
    %v787 = vld [vmem:[#allocation5] sm:$0xff]
    %v788 = vld [vmem:[#allocation5 + $0x8] sm:$0xff]
    %vm789 = vcmp.eq.f32.partialorder %v787, 0.0
    %vm790 = vcmp.eq.f32.partialorder %v788, 0.0
    %v791 = vsel %vm789, 1, 0
    %v792 = vsel %vm790, 1, 0
    %vm793 = vcmp.eq.s32.totalorder %v791, 1
    %vm794 = vcmp.eq.s32.totalorder %v792, 1
    %v795 = vsel %vm793, -1e+10, %v779
    %v796 = vsel %vm794, -1e+10, %v780
    %v797 = vsel %vm793, -1e+10, %v781
    %v798 = vsel %vm794, -1e+10, %v782
    %v799 = vsel %vm793, -1e+10, %v783
    %v800 = vsel %vm794, -1e+10, %v784
    %v801 = vsel %vm793, -1e+10, %v785
    %v802 = vsel %vm794, -1e+10, %v786
    %v803 = vsel %vm172, %v795, -inf
    %804 = vmax.xlane.f32.xlu0 %v803
    %v805 = vpop.xlane.xlu0 %804
    %v806 = vsel %vm172, %v796, -inf
    %807 = vmax.xlane.f32.xlu0 %v806
    %v808 = vpop.xlane.xlu0 %807
    %v809 = vsel %vm172, %v797, -inf
    %810 = vmax.xlane.f32.xlu0 %v809
    %v811 = vpop.xlane.xlu0 %810
    %v812 = vsel %vm172, %v798, -inf
    %813 = vmax.xlane.f32.xlu0 %v812
    %v814 = vpop.xlane.xlu0 %813
    %v815 = vsel %vm172, %v799, -inf
    %816 = vmax.xlane.f32.xlu0 %v815
    %v817 = vpop.xlane.xlu0 %816
    %v818 = vsel %vm172, %v800, -inf
    %819 = vmax.xlane.f32.xlu0 %v818
    %v820 = vpop.xlane.xlu0 %819
    %v821 = vsel %vm172, %v801, -inf
    %822 = vmax.xlane.f32.xlu0 %v821
    %v823 = vpop.xlane.xlu0 %822
    %v824 = vsel %vm172, %v802, -inf
    %825 = vmax.xlane.f32.xlu0 %v824
    %v826 = vpop.xlane.xlu0 %825
    %v827 = vsub.f32 %v795, %v805
    %v828 = vsub.f32 %v796, %v808
    %v829 = vsub.f32 %v797, %v811
    %v830 = vsub.f32 %v798, %v814
    %v831 = vsub.f32 %v799, %v817
    %v832 = vsub.f32 %v800, %v820
    %v833 = vsub.f32 %v801, %v823
    %v834 = vsub.f32 %v802, %v826
    %v835 = vmul.f32 %v827, 1.442695
    %v836 = vpow.pop %v835
    %v837 = vmul.f32 %v828, 1.442695
    %v838 = vpow.pop %v837
    %v839 = vmul.f32 %v829, 1.442695
    %v840 = vpow.pop %v839
    %v841 = vmul.f32 %v830, 1.442695
    %v842 = vpow.pop %v841
    %v843 = vmul.f32 %v831, 1.442695
    %v844 = vpow.pop %v843
    %v845 = vmul.f32 %v832, 1.442695
    %v846 = vpow.pop %v845
    %v847 = vmul.f32 %v833, 1.442695
    %v848 = vpow.pop %v847
    %v849 = vmul.f32 %v834, 1.442695
    %v850 = vpow.pop %v849
    %v851 = vsel %vm172, %v836, 0.0
    %852 = vadd.xlane.f32.xlu0 %v851
    %v853 = vpop.xlane.xlu0 %852
    %v854 = vsel %vm172, %v838, 0.0
    %855 = vadd.xlane.f32.xlu0 %v854
    %v856 = vpop.xlane.xlu0 %855
    %v857 = vsel %vm172, %v840, 0.0
    %858 = vadd.xlane.f32.xlu0 %v857
    %v859 = vpop.xlane.xlu0 %858
    %v860 = vsel %vm172, %v842, 0.0
    %861 = vadd.xlane.f32.xlu0 %v860
    %v862 = vpop.xlane.xlu0 %861
    %v863 = vsel %vm172, %v844, 0.0
    %864 = vadd.xlane.f32.xlu0 %v863
    %v865 = vpop.xlane.xlu0 %864
    %v866 = vsel %vm172, %v846, 0.0
    %867 = vadd.xlane.f32.xlu0 %v866
    %v868 = vpop.xlane.xlu0 %867
    %v869 = vsel %vm172, %v848, 0.0
    %870 = vadd.xlane.f32.xlu0 %v869
    %v871 = vpop.xlane.xlu0 %870
    %v872 = vsel %vm172, %v850, 0.0
    %873 = vadd.xlane.f32.xlu0 %v872
    %v874 = vpop.xlane.xlu0 %873
    %v875 = vrcp.pop %v853
    %v876 = vrcp.pop %v856
    %v877 = vrcp.pop %v859
    %v878 = vrcp.pop %v862
    %v879 = vrcp.pop %v865
    %v880 = vrcp.pop %v868
    %v881 = vrcp.pop %v871
    %v882 = vrcp.pop %v874
    %v883 = vmul.f32 %v836, %v875
    %v884 = vmul.f32 %v838, %v876
    %v885 = vmul.f32 %v840, %v877
    %v886 = vmul.f32 %v842, %v878
    %v887 = vmul.f32 %v844, %v879
    %v888 = vmul.f32 %v846, %v880
    %v889 = vmul.f32 %v848, %v881
    %v890 = vmul.f32 %v850, %v882
    %891 = vrot.lane.b32.xlu0 %v148, 64
    %v892 = vpop.permute.xlu0 %891
    %v895 = vsel %vm172, %v883, 0
    %897 = vmatprep.subr.mxu0 0.0
    %898 = vmatpush1.msra.mxu0 %v892
    %899 = vmatprep.subr.mxu0 0.0
    %900 = vmatpush1.msra.mxu0 0.0
    %901 = vmatprep.subr.mxu0 0.0
    %902 = vmatpush1.msra.mxu0 0.0
    %903 = vmatprep.subr.mxu0 0.0
    %904 = vmatpush1.msra.mxu0 0.0
    %905 = vmatprep.subr.mxu0 0.0
    %906 = vmatpush1.msra.mxu0 0.0
    %907 = vmatprep.subr.mxu0 0.0
    %908 = vmatpush1.msra.mxu0 0.0
    %909 = vmatprep.subr.mxu0 0.0
    %910 = vmatpush1.msra.mxu0 0.0
    %911 = vmatprep.subr.mxu0 0.0
    %912 = vmatpush1.msra.mxu0 0.0
    %913 = vmatprep.subr.mxu0 0.0
    %914 = vmatpush1.msra.mxu0 0.0
    %915 = vmatprep.subr.mxu0 0.0
    %916 = vmatpush1.msra.mxu0 0.0
    %917 = vmatprep.subr.mxu0 0.0
    %918 = vmatpush1.msra.mxu0 0.0
    %919 = vmatprep.subr.mxu0 0.0
    %920 = vmatpush1.msra.mxu0 0.0
    %921 = vmatprep.subr.mxu0 0.0
    %922 = vmatpush1.msra.mxu0 0.0
    %923 = vmatprep.subr.mxu0 0.0
    %924 = vmatpush1.msra.mxu0 0.0
    %925 = vmatprep.subr.mxu0 0.0
    %926 = vmatpush1.msra.mxu0 0.0
    %927 = vmatprep.subr.mxu0 0.0
    %928 = vmatpush1.msra.mxu0 0.0
    %929 = vmatprep.subr.mxu0 0.0
    %930 = vmatpush1.msra.mxu0 0.0
    %931 = vmatprep.subr.mxu0 0.0
    %932 = vmatpush1.msra.mxu0 0.0
    %933 = vmatprep.subr.mxu0 0.0
    %934 = vmatpush1.msra.mxu0 0.0
    %935 = vmatprep.subr.mxu0 0.0
    %936 = vmatpush1.msra.mxu0 0.0
    %937 = vmatprep.subr.mxu0 0.0
    %938 = vmatpush1.msra.mxu0 0.0
    %939 = vmatprep.subr.mxu0 0.0
    %940 = vmatpush1.msra.mxu0 0.0
    %941 = vmatprep.subr.mxu0 0.0
    %942 = vmatpush1.msra.mxu0 0.0
    %943 = vmatprep.subr.mxu0 0.0
    %944 = vmatpush1.msra.mxu0 0.0
    %945 = vmatprep.subr.mxu0 0.0
    %946 = vmatpush1.msra.mxu0 0.0
    %947 = vmatprep.subr.mxu0 0.0
    %948 = vmatpush1.msra.mxu0 0.0
    %949 = vmatprep.subr.mxu0 0.0
    %950 = vmatpush1.msra.mxu0 0.0
    %951 = vmatprep.subr.mxu0 0.0
    %952 = vmatpush1.msra.mxu0 0.0
    %953 = vmatprep.subr.mxu0 0.0
    %954 = vmatpush1.msra.mxu0 0.0
    %955 = vmatprep.subr.mxu0 0.0
    %956 = vmatpush1.msra.mxu0 0.0
    %957 = vmatprep.subr.mxu0 0.0
    %958 = vmatpush1.msra.mxu0 0.0
    %959 = vmatprep.subr.mxu0 0.0
    %960 = vmatpush1.msra.mxu0 0.0
    %961 = vmatprep.mubr.f32.mxu0 0.0
    %962 = vmatmul.mubr.f32.gmra.mrb[0].mxu0 %v895
    %v963 = vpop.f32.mrb[0].mxu0
    %v964 = vadd.f32 0.0, %v963
    %v965 = vpop.f32.mrb[0].mxu0
    %966 = vdwg.mxu0
    %967 = vrot.lane.b32.xlu0 %v153, 64
    %v968 = vpop.permute.xlu0 %967
    %v971 = vsel %vm172, %v884, 0
    %973 = vmatprep.subr.mxu0 0.0
    %974 = vmatpush1.msra.mxu0 %v968
    %975 = vmatprep.subr.mxu0 0.0
    %976 = vmatpush1.msra.mxu0 0.0
    %977 = vmatprep.subr.mxu0 0.0
    %978 = vmatpush1.msra.mxu0 0.0
    %979 = vmatprep.subr.mxu0 0.0
    %980 = vmatpush1.msra.mxu0 0.0
    %981 = vmatprep.subr.mxu0 0.0
    %982 = vmatpush1.msra.mxu0 0.0
    %983 = vmatprep.subr.mxu0 0.0
    %984 = vmatpush1.msra.mxu0 0.0
    %985 = vmatprep.subr.mxu0 0.0
    %986 = vmatpush1.msra.mxu0 0.0
    %987 = vmatprep.subr.mxu0 0.0
    %988 = vmatpush1.msra.mxu0 0.0
    %989 = vmatprep.subr.mxu0 0.0
    %990 = vmatpush1.msra.mxu0 0.0
    %991 = vmatprep.subr.mxu0 0.0
    %992 = vmatpush1.msra.mxu0 0.0
    %993 = vmatprep.subr.mxu0 0.0
    %994 = vmatpush1.msra.mxu0 0.0
    %995 = vmatprep.subr.mxu0 0.0
    %996 = vmatpush1.msra.mxu0 0.0
    %997 = vmatprep.subr.mxu0 0.0
    %998 = vmatpush1.msra.mxu0 0.0
    %999 = vmatprep.subr.mxu0 0.0
    %1000 = vmatpush1.msra.mxu0 0.0
    %1001 = vmatprep.subr.mxu0 0.0
    %1002 = vmatpush1.msra.mxu0 0.0
    %1003 = vmatprep.subr.mxu0 0.0
    %1004 = vmatpush1.msra.mxu0 0.0
    %1005 = vmatprep.subr.mxu0 0.0
    %1006 = vmatpush1.msra.mxu0 0.0
    %1007 = vmatprep.subr.mxu0 0.0
    %1008 = vmatpush1.msra.mxu0 0.0
    %1009 = vmatprep.subr.mxu0 0.0
    %1010 = vmatpush1.msra.mxu0 0.0
    %1011 = vmatprep.subr.mxu0 0.0
    %1012 = vmatpush1.msra.mxu0 0.0
    %1013 = vmatprep.subr.mxu0 0.0
    %1014 = vmatpush1.msra.mxu0 0.0
    %1015 = vmatprep.subr.mxu0 0.0
    %1016 = vmatpush1.msra.mxu0 0.0
    %1017 = vmatprep.subr.mxu0 0.0
    %1018 = vmatpush1.msra.mxu0 0.0
    %1019 = vmatprep.subr.mxu0 0.0
    %1020 = vmatpush1.msra.mxu0 0.0
    %1021 = vmatprep.subr.mxu0 0.0
    %1022 = vmatpush1.msra.mxu0 0.0
    %1023 = vmatprep.subr.mxu0 0.0
    %1024 = vmatpush1.msra.mxu0 0.0
    %1025 = vmatprep.subr.mxu0 0.0
    %1026 = vmatpush1.msra.mxu0 0.0
    %1027 = vmatprep.subr.mxu0 0.0
    %1028 = vmatpush1.msra.mxu0 0.0
    %1029 = vmatprep.subr.mxu0 0.0
    %1030 = vmatpush1.msra.mxu0 0.0
    %1031 = vmatprep.subr.mxu0 0.0
    %1032 = vmatpush1.msra.mxu0 0.0
    %1033 = vmatprep.subr.mxu0 0.0
    %1034 = vmatpush1.msra.mxu0 0.0
    %1035 = vmatprep.subr.mxu0 0.0
    %1036 = vmatpush1.msra.mxu0 0.0
    %1037 = vmatprep.mubr.f32.mxu0 0.0
    %1038 = vmatmul.mubr.f32.gmra.mrb[0].mxu0 %v971
    %v1039 = vpop.f32.mrb[0].mxu0
    %v1040 = vadd.f32 0.0, %v1039
    %v1041 = vpop.f32.mrb[0].mxu0
    %1042 = vdwg.mxu0
    %1043 = vrot.lane.b32.xlu0 %v159, 64
    %v1044 = vpop.permute.xlu0 %1043
    %v1047 = vsel %vm172, %v885, 0
    %1049 = vmatprep.subr.mxu0 0.0
    %1050 = vmatpush1.msra.mxu0 %v1044
    %1051 = vmatprep.subr.mxu0 0.0
    %1052 = vmatpush1.msra.mxu0 0.0
    %1053 = vmatprep.subr.mxu0 0.0
    %1054 = vmatpush1.msra.mxu0 0.0
    %1055 = vmatprep.subr.mxu0 0.0
    %1056 = vmatpush1.msra.mxu0 0.0
    %1057 = vmatprep.subr.mxu0 0.0
    %1058 = vmatpush1.msra.mxu0 0.0
    %1059 = vmatprep.subr.mxu0 0.0
    %1060 = vmatpush1.msra.mxu0 0.0
    %1061 = vmatprep.subr.mxu0 0.0
    %1062 = vmatpush1.msra.mxu0 0.0
    %1063 = vmatprep.subr.mxu0 0.0
    %1064 = vmatpush1.msra.mxu0 0.0
    %1065 = vmatprep.subr.mxu0 0.0
    %1066 = vmatpush1.msra.mxu0 0.0
    %1067 = vmatprep.subr.mxu0 0.0
    %1068 = vmatpush1.msra.mxu0 0.0
    %1069 = vmatprep.subr.mxu0 0.0
    %1070 = vmatpush1.msra.mxu0 0.0
    %1071 = vmatprep.subr.mxu0 0.0
    %1072 = vmatpush1.msra.mxu0 0.0
    %1073 = vmatprep.subr.mxu0 0.0
    %1074 = vmatpush1.msra.mxu0 0.0
    %1075 = vmatprep.subr.mxu0 0.0
    %1076 = vmatpush1.msra.mxu0 0.0
    %1077 = vmatprep.subr.mxu0 0.0
    %1078 = vmatpush1.msra.mxu0 0.0
    %1079 = vmatprep.subr.mxu0 0.0
    %1080 = vmatpush1.msra.mxu0 0.0
    %1081 = vmatprep.subr.mxu0 0.0
    %1082 = vmatpush1.msra.mxu0 0.0
    %1083 = vmatprep.subr.mxu0 0.0
    %1084 = vmatpush1.msra.mxu0 0.0
    %1085 = vmatprep.subr.mxu0 0.0
    %1086 = vmatpush1.msra.mxu0 0.0
    %1087 = vmatprep.subr.mxu0 0.0
    %1088 = vmatpush1.msra.mxu0 0.0
    %1089 = vmatprep.subr.mxu0 0.0
    %1090 = vmatpush1.msra.mxu0 0.0
    %1091 = vmatprep.subr.mxu0 0.0
    %1092 = vmatpush1.msra.mxu0 0.0
    %1093 = vmatprep.subr.mxu0 0.0
    %1094 = vmatpush1.msra.mxu0 0.0
    %1095 = vmatprep.subr.mxu0 0.0
    %1096 = vmatpush1.msra.mxu0 0.0
    %1097 = vmatprep.subr.mxu0 0.0
    %1098 = vmatpush1.msra.mxu0 0.0
    %1099 = vmatprep.subr.mxu0 0.0
    %1100 = vmatpush1.msra.mxu0 0.0
    %1101 = vmatprep.subr.mxu0 0.0
    %1102 = vmatpush1.msra.mxu0 0.0
    %1103 = vmatprep.subr.mxu0 0.0
    %1104 = vmatpush1.msra.mxu0 0.0
    %1105 = vmatprep.subr.mxu0 0.0
    %1106 = vmatpush1.msra.mxu0 0.0
    %1107 = vmatprep.subr.mxu0 0.0
    %1108 = vmatpush1.msra.mxu0 0.0
    %1109 = vmatprep.subr.mxu0 0.0
    %1110 = vmatpush1.msra.mxu0 0.0
    %1111 = vmatprep.subr.mxu0 0.0
    %1112 = vmatpush1.msra.mxu0 0.0
    %1113 = vmatprep.mubr.f32.mxu0 0.0
    %1114 = vmatmul.mubr.f32.gmra.mrb[0].mxu0 %v1047
    %v1115 = vpop.f32.mrb[0].mxu0
    %v1116 = vadd.f32 0.0, %v1115
    %v1117 = vpop.f32.mrb[0].mxu0
    %1118 = vdwg.mxu0
    %1119 = vrot.lane.b32.xlu0 %v161, 64
    %v1120 = vpop.permute.xlu0 %1119
    %v1123 = vsel %vm172, %v886, 0
    %1125 = vmatprep.subr.mxu0 0.0
    %1126 = vmatpush1.msra.mxu0 %v1120
    %1127 = vmatprep.subr.mxu0 0.0
    %1128 = vmatpush1.msra.mxu0 0.0
    %1129 = vmatprep.subr.mxu0 0.0
    %1130 = vmatpush1.msra.mxu0 0.0
    %1131 = vmatprep.subr.mxu0 0.0
    %1132 = vmatpush1.msra.mxu0 0.0
    %1133 = vmatprep.subr.mxu0 0.0
    %1134 = vmatpush1.msra.mxu0 0.0
    %1135 = vmatprep.subr.mxu0 0.0
    %1136 = vmatpush1.msra.mxu0 0.0
    %1137 = vmatprep.subr.mxu0 0.0
    %1138 = vmatpush1.msra.mxu0 0.0
    %1139 = vmatprep.subr.mxu0 0.0
    %1140 = vmatpush1.msra.mxu0 0.0
    %1141 = vmatprep.subr.mxu0 0.0
    %1142 = vmatpush1.msra.mxu0 0.0
    %1143 = vmatprep.subr.mxu0 0.0
    %1144 = vmatpush1.msra.mxu0 0.0
    %1145 = vmatprep.subr.mxu0 0.0
    %1146 = vmatpush1.msra.mxu0 0.0
    %1147 = vmatprep.subr.mxu0 0.0
    %1148 = vmatpush1.msra.mxu0 0.0
    %1149 = vmatprep.subr.mxu0 0.0
    %1150 = vmatpush1.msra.mxu0 0.0
    %1151 = vmatprep.subr.mxu0 0.0
    %1152 = vmatpush1.msra.mxu0 0.0
    %1153 = vmatprep.subr.mxu0 0.0
    %1154 = vmatpush1.msra.mxu0 0.0
    %1155 = vmatprep.subr.mxu0 0.0
    %1156 = vmatpush1.msra.mxu0 0.0
    %1157 = vmatprep.subr.mxu0 0.0
    %1158 = vmatpush1.msra.mxu0 0.0
    %1159 = vmatprep.subr.mxu0 0.0
    %1160 = vmatpush1.msra.mxu0 0.0
    %1161 = vmatprep.subr.mxu0 0.0
    %1162 = vmatpush1.msra.mxu0 0.0
    %1163 = vmatprep.subr.mxu0 0.0
    %1164 = vmatpush1.msra.mxu0 0.0
    %1165 = vmatprep.subr.mxu0 0.0
    %1166 = vmatpush1.msra.mxu0 0.0
    %1167 = vmatprep.subr.mxu0 0.0
    %1168 = vmatpush1.msra.mxu0 0.0
    %1169 = vmatprep.subr.mxu0 0.0
    %1170 = vmatpush1.msra.mxu0 0.0
    %1171 = vmatprep.subr.mxu0 0.0
    %1172 = vmatpush1.msra.mxu0 0.0
    %1173 = vmatprep.subr.mxu0 0.0
    %1174 = vmatpush1.msra.mxu0 0.0
    %1175 = vmatprep.subr.mxu0 0.0
    %1176 = vmatpush1.msra.mxu0 0.0
    %1177 = vmatprep.subr.mxu0 0.0
    %1178 = vmatpush1.msra.mxu0 0.0
    %1179 = vmatprep.subr.mxu0 0.0
    %1180 = vmatpush1.msra.mxu0 0.0
    %1181 = vmatprep.subr.mxu0 0.0
    %1182 = vmatpush1.msra.mxu0 0.0
    %1183 = vmatprep.subr.mxu0 0.0
    %1184 = vmatpush1.msra.mxu0 0.0
    %1185 = vmatprep.subr.mxu0 0.0
    %1186 = vmatpush1.msra.mxu0 0.0
    %1187 = vmatprep.subr.mxu0 0.0
    %1188 = vmatpush1.msra.mxu0 0.0
    %1189 = vmatprep.mubr.f32.mxu0 0.0
    %1190 = vmatmul.mubr.f32.gmra.mrb[0].mxu0 %v1123
    %v1191 = vpop.f32.mrb[0].mxu0
    %v1192 = vadd.f32 0.0, %v1191
    %v1193 = vpop.f32.mrb[0].mxu0
    %1194 = vdwg.mxu0
    %1195 = vrot.lane.b32.xlu0 %v163, 64
    %v1196 = vpop.permute.xlu0 %1195
    %v1199 = vsel %vm172, %v887, 0
    %1201 = vmatprep.subr.mxu0 0.0
    %1202 = vmatpush1.msra.mxu0 %v1196
    %1203 = vmatprep.subr.mxu0 0.0
    %1204 = vmatpush1.msra.mxu0 0.0
    %1205 = vmatprep.subr.mxu0 0.0
    %1206 = vmatpush1.msra.mxu0 0.0
    %1207 = vmatprep.subr.mxu0 0.0
    %1208 = vmatpush1.msra.mxu0 0.0
    %1209 = vmatprep.subr.mxu0 0.0
    %1210 = vmatpush1.msra.mxu0 0.0
    %1211 = vmatprep.subr.mxu0 0.0
    %1212 = vmatpush1.msra.mxu0 0.0
    %1213 = vmatprep.subr.mxu0 0.0
    %1214 = vmatpush1.msra.mxu0 0.0
    %1215 = vmatprep.subr.mxu0 0.0
    %1216 = vmatpush1.msra.mxu0 0.0
    %1217 = vmatprep.subr.mxu0 0.0
    %1218 = vmatpush1.msra.mxu0 0.0
    %1219 = vmatprep.subr.mxu0 0.0
    %1220 = vmatpush1.msra.mxu0 0.0
    %1221 = vmatprep.subr.mxu0 0.0
    %1222 = vmatpush1.msra.mxu0 0.0
    %1223 = vmatprep.subr.mxu0 0.0
    %1224 = vmatpush1.msra.mxu0 0.0
    %1225 = vmatprep.subr.mxu0 0.0
    %1226 = vmatpush1.msra.mxu0 0.0
    %1227 = vmatprep.subr.mxu0 0.0
    %1228 = vmatpush1.msra.mxu0 0.0
    %1229 = vmatprep.subr.mxu0 0.0
    %1230 = vmatpush1.msra.mxu0 0.0
    %1231 = vmatprep.subr.mxu0 0.0
    %1232 = vmatpush1.msra.mxu0 0.0
    %1233 = vmatprep.subr.mxu0 0.0
    %1234 = vmatpush1.msra.mxu0 0.0
    %1235 = vmatprep.subr.mxu0 0.0
    %1236 = vmatpush1.msra.mxu0 0.0
    %1237 = vmatprep.subr.mxu0 0.0
    %1238 = vmatpush1.msra.mxu0 0.0
    %1239 = vmatprep.subr.mxu0 0.0
    %1240 = vmatpush1.msra.mxu0 0.0
    %1241 = vmatprep.subr.mxu0 0.0
    %1242 = vmatpush1.msra.mxu0 0.0
    %1243 = vmatprep.subr.mxu0 0.0
    %1244 = vmatpush1.msra.mxu0 0.0
    %1245 = vmatprep.subr.mxu0 0.0
    %1246 = vmatpush1.msra.mxu0 0.0
    %1247 = vmatprep.subr.mxu0 0.0
    %1248 = vmatpush1.msra.mxu0 0.0
    %1249 = vmatprep.subr.mxu0 0.0
    %1250 = vmatpush1.msra.mxu0 0.0
    %1251 = vmatprep.subr.mxu0 0.0
    %1252 = vmatpush1.msra.mxu0 0.0
    %1253 = vmatprep.subr.mxu0 0.0
    %1254 = vmatpush1.msra.mxu0 0.0
    %1255 = vmatprep.subr.mxu0 0.0
    %1256 = vmatpush1.msra.mxu0 0.0
    %1257 = vmatprep.subr.mxu0 0.0
    %1258 = vmatpush1.msra.mxu0 0.0
    %1259 = vmatprep.subr.mxu0 0.0
    %1260 = vmatpush1.msra.mxu0 0.0
    %1261 = vmatprep.subr.mxu0 0.0
    %1262 = vmatpush1.msra.mxu0 0.0
    %1263 = vmatprep.subr.mxu0 0.0
    %1264 = vmatpush1.msra.mxu0 0.0
    %1265 = vmatprep.mubr.f32.mxu0 0.0
    %1266 = vmatmul.mubr.f32.gmra.mrb[0].mxu0 %v1199
    %v1267 = vpop.f32.mrb[0].mxu0
    %v1268 = vadd.f32 0.0, %v1267
    %v1269 = vpop.f32.mrb[0].mxu0
    %1270 = vdwg.mxu0
    %1271 = vrot.lane.b32.xlu0 %v165, 64
    %v1272 = vpop.permute.xlu0 %1271
    %v1275 = vsel %vm172, %v888, 0
    %1277 = vmatprep.subr.mxu0 0.0
    %1278 = vmatpush1.msra.mxu0 %v1272
    %1279 = vmatprep.subr.mxu0 0.0
    %1280 = vmatpush1.msra.mxu0 0.0
    %1281 = vmatprep.subr.mxu0 0.0
    %1282 = vmatpush1.msra.mxu0 0.0
    %1283 = vmatprep.subr.mxu0 0.0
    %1284 = vmatpush1.msra.mxu0 0.0
    %1285 = vmatprep.subr.mxu0 0.0
    %1286 = vmatpush1.msra.mxu0 0.0
    %1287 = vmatprep.subr.mxu0 0.0
    %1288 = vmatpush1.msra.mxu0 0.0
    %1289 = vmatprep.subr.mxu0 0.0
    %1290 = vmatpush1.msra.mxu0 0.0
    %1291 = vmatprep.subr.mxu0 0.0
    %1292 = vmatpush1.msra.mxu0 0.0
    %1293 = vmatprep.subr.mxu0 0.0
    %1294 = vmatpush1.msra.mxu0 0.0
    %1295 = vmatprep.subr.mxu0 0.0
    %1296 = vmatpush1.msra.mxu0 0.0
    %1297 = vmatprep.subr.mxu0 0.0
    %1298 = vmatpush1.msra.mxu0 0.0
    %1299 = vmatprep.subr.mxu0 0.0
    %1300 = vmatpush1.msra.mxu0 0.0
    %1301 = vmatprep.subr.mxu0 0.0
    %1302 = vmatpush1.msra.mxu0 0.0
    %1303 = vmatprep.subr.mxu0 0.0
    %1304 = vmatpush1.msra.mxu0 0.0
    %1305 = vmatprep.subr.mxu0 0.0
    %1306 = vmatpush1.msra.mxu0 0.0
    %1307 = vmatprep.subr.mxu0 0.0
    %1308 = vmatpush1.msra.mxu0 0.0
    %1309 = vmatprep.subr.mxu0 0.0
    %1310 = vmatpush1.msra.mxu0 0.0
    %1311 = vmatprep.subr.mxu0 0.0
    %1312 = vmatpush1.msra.mxu0 0.0
    %1313 = vmatprep.subr.mxu0 0.0
    %1314 = vmatpush1.msra.mxu0 0.0
    %1315 = vmatprep.subr.mxu0 0.0
    %1316 = vmatpush1.msra.mxu0 0.0
    %1317 = vmatprep.subr.mxu0 0.0
    %1318 = vmatpush1.msra.mxu0 0.0
    %1319 = vmatprep.subr.mxu0 0.0
    %1320 = vmatpush1.msra.mxu0 0.0
    %1321 = vmatprep.subr.mxu0 0.0
    %1322 = vmatpush1.msra.mxu0 0.0
    %1323 = vmatprep.subr.mxu0 0.0
    %1324 = vmatpush1.msra.mxu0 0.0
    %1325 = vmatprep.subr.mxu0 0.0
    %1326 = vmatpush1.msra.mxu0 0.0
    %1327 = vmatprep.subr.mxu0 0.0
    %1328 = vmatpush1.msra.mxu0 0.0
    %1329 = vmatprep.subr.mxu0 0.0
    %1330 = vmatpush1.msra.mxu0 0.0
    %1331 = vmatprep.subr.mxu0 0.0
    %1332 = vmatpush1.msra.mxu0 0.0
    %1333 = vmatprep.subr.mxu0 0.0
    %1334 = vmatpush1.msra.mxu0 0.0
    %1335 = vmatprep.subr.mxu0 0.0
    %1336 = vmatpush1.msra.mxu0 0.0
    %1337 = vmatprep.subr.mxu0 0.0
    %1338 = vmatpush1.msra.mxu0 0.0
    %1339 = vmatprep.subr.mxu0 0.0
    %1340 = vmatpush1.msra.mxu0 0.0
    %1341 = vmatprep.mubr.f32.mxu0 0.0
    %1342 = vmatmul.mubr.f32.gmra.mrb[0].mxu0 %v1275
    %v1343 = vpop.f32.mrb[0].mxu0
    %v1344 = vadd.f32 0.0, %v1343
    %v1345 = vpop.f32.mrb[0].mxu0
    %1346 = vdwg.mxu0
    %1347 = vrot.lane.b32.xlu0 %v167, 64
    %v1348 = vpop.permute.xlu0 %1347
    %v1351 = vsel %vm172, %v889, 0
    %1353 = vmatprep.subr.mxu0 0.0
    %1354 = vmatpush1.msra.mxu0 %v1348
    %1355 = vmatprep.subr.mxu0 0.0
    %1356 = vmatpush1.msra.mxu0 0.0
    %1357 = vmatprep.subr.mxu0 0.0
    %1358 = vmatpush1.msra.mxu0 0.0
    %1359 = vmatprep.subr.mxu0 0.0
    %1360 = vmatpush1.msra.mxu0 0.0
    %1361 = vmatprep.subr.mxu0 0.0
    %1362 = vmatpush1.msra.mxu0 0.0
    %1363 = vmatprep.subr.mxu0 0.0
    %1364 = vmatpush1.msra.mxu0 0.0
    %1365 = vmatprep.subr.mxu0 0.0
    %1366 = vmatpush1.msra.mxu0 0.0
    %1367 = vmatprep.subr.mxu0 0.0
    %1368 = vmatpush1.msra.mxu0 0.0
    %1369 = vmatprep.subr.mxu0 0.0
    %1370 = vmatpush1.msra.mxu0 0.0
    %1371 = vmatprep.subr.mxu0 0.0
    %1372 = vmatpush1.msra.mxu0 0.0
    %1373 = vmatprep.subr.mxu0 0.0
    %1374 = vmatpush1.msra.mxu0 0.0
    %1375 = vmatprep.subr.mxu0 0.0
    %1376 = vmatpush1.msra.mxu0 0.0
    %1377 = vmatprep.subr.mxu0 0.0
    %1378 = vmatpush1.msra.mxu0 0.0
    %1379 = vmatprep.subr.mxu0 0.0
    %1380 = vmatpush1.msra.mxu0 0.0
    %1381 = vmatprep.subr.mxu0 0.0
    %1382 = vmatpush1.msra.mxu0 0.0
    %1383 = vmatprep.subr.mxu0 0.0
    %1384 = vmatpush1.msra.mxu0 0.0
    %1385 = vmatprep.subr.mxu0 0.0
    %1386 = vmatpush1.msra.mxu0 0.0
    %1387 = vmatprep.subr.mxu0 0.0
    %1388 = vmatpush1.msra.mxu0 0.0
    %1389 = vmatprep.subr.mxu0 0.0
    %1390 = vmatpush1.msra.mxu0 0.0
    %1391 = vmatprep.subr.mxu0 0.0
    %1392 = vmatpush1.msra.mxu0 0.0
    %1393 = vmatprep.subr.mxu0 0.0
    %1394 = vmatpush1.msra.mxu0 0.0
    %1395 = vmatprep.subr.mxu0 0.0
    %1396 = vmatpush1.msra.mxu0 0.0
    %1397 = vmatprep.subr.mxu0 0.0
    %1398 = vmatpush1.msra.mxu0 0.0
    %1399 = vmatprep.subr.mxu0 0.0
    %1400 = vmatpush1.msra.mxu0 0.0
    %1401 = vmatprep.subr.mxu0 0.0
    %1402 = vmatpush1.msra.mxu0 0.0
    %1403 = vmatprep.subr.mxu0 0.0
    %1404 = vmatpush1.msra.mxu0 0.0
    %1405 = vmatprep.subr.mxu0 0.0
    %1406 = vmatpush1.msra.mxu0 0.0
    %1407 = vmatprep.subr.mxu0 0.0
    %1408 = vmatpush1.msra.mxu0 0.0
    %1409 = vmatprep.subr.mxu0 0.0
    %1410 = vmatpush1.msra.mxu0 0.0
    %1411 = vmatprep.subr.mxu0 0.0
    %1412 = vmatpush1.msra.mxu0 0.0
    %1413 = vmatprep.subr.mxu0 0.0
    %1414 = vmatpush1.msra.mxu0 0.0
    %1415 = vmatprep.subr.mxu0 0.0
    %1416 = vmatpush1.msra.mxu0 0.0
    %1417 = vmatprep.mubr.f32.mxu0 0.0
    %1418 = vmatmul.mubr.f32.gmra.mrb[0].mxu0 %v1351
    %v1419 = vpop.f32.mrb[0].mxu0
    %v1420 = vadd.f32 0.0, %v1419
    %v1421 = vpop.f32.mrb[0].mxu0
    %1422 = vdwg.mxu0
    %1423 = vrot.lane.b32.xlu0 %v169, 64
    %v1424 = vpop.permute.xlu0 %1423
    %v1427 = vsel %vm172, %v890, 0
    %1429 = vmatprep.subr.mxu0 0.0
    %1430 = vmatpush1.msra.mxu0 %v1424
    %1431 = vmatprep.subr.mxu0 0.0
    %1432 = vmatpush1.msra.mxu0 0.0
    %1433 = vmatprep.subr.mxu0 0.0
    %1434 = vmatpush1.msra.mxu0 0.0
    %1435 = vmatprep.subr.mxu0 0.0
    %1436 = vmatpush1.msra.mxu0 0.0
    %1437 = vmatprep.subr.mxu0 0.0
    %1438 = vmatpush1.msra.mxu0 0.0
    %1439 = vmatprep.subr.mxu0 0.0
    %1440 = vmatpush1.msra.mxu0 0.0
    %1441 = vmatprep.subr.mxu0 0.0
    %1442 = vmatpush1.msra.mxu0 0.0
    %1443 = vmatprep.subr.mxu0 0.0
    %1444 = vmatpush1.msra.mxu0 0.0
    %1445 = vmatprep.subr.mxu0 0.0
    %1446 = vmatpush1.msra.mxu0 0.0
    %1447 = vmatprep.subr.mxu0 0.0
    %1448 = vmatpush1.msra.mxu0 0.0
    %1449 = vmatprep.subr.mxu0 0.0
    %1450 = vmatpush1.msra.mxu0 0.0
    %1451 = vmatprep.subr.mxu0 0.0
    %1452 = vmatpush1.msra.mxu0 0.0
    %1453 = vmatprep.subr.mxu0 0.0
    %1454 = vmatpush1.msra.mxu0 0.0
    %1455 = vmatprep.subr.mxu0 0.0
    %1456 = vmatpush1.msra.mxu0 0.0
    %1457 = vmatprep.subr.mxu0 0.0
    %1458 = vmatpush1.msra.mxu0 0.0
    %1459 = vmatprep.subr.mxu0 0.0
    %1460 = vmatpush1.msra.mxu0 0.0
    %1461 = vmatprep.subr.mxu0 0.0
    %1462 = vmatpush1.msra.mxu0 0.0
    %1463 = vmatprep.subr.mxu0 0.0
    %1464 = vmatpush1.msra.mxu0 0.0
    %1465 = vmatprep.subr.mxu0 0.0
    %1466 = vmatpush1.msra.mxu0 0.0
    %1467 = vmatprep.subr.mxu0 0.0
    %1468 = vmatpush1.msra.mxu0 0.0
    %1469 = vmatprep.subr.mxu0 0.0
    %1470 = vmatpush1.msra.mxu0 0.0
    %1471 = vmatprep.subr.mxu0 0.0
    %1472 = vmatpush1.msra.mxu0 0.0
    %1473 = vmatprep.subr.mxu0 0.0
    %1474 = vmatpush1.msra.mxu0 0.0
    %1475 = vmatprep.subr.mxu0 0.0
    %1476 = vmatpush1.msra.mxu0 0.0
    %1477 = vmatprep.subr.mxu0 0.0
    %1478 = vmatpush1.msra.mxu0 0.0
    %1479 = vmatprep.subr.mxu0 0.0
    %1480 = vmatpush1.msra.mxu0 0.0
    %1481 = vmatprep.subr.mxu0 0.0
    %1482 = vmatpush1.msra.mxu0 0.0
    %1483 = vmatprep.subr.mxu0 0.0
    %1484 = vmatpush1.msra.mxu0 0.0
    %1485 = vmatprep.subr.mxu0 0.0
    %1486 = vmatpush1.msra.mxu0 0.0
    %1487 = vmatprep.subr.mxu0 0.0
    %1488 = vmatpush1.msra.mxu0 0.0
    %1489 = vmatprep.subr.mxu0 0.0
    %1490 = vmatpush1.msra.mxu0 0.0
    %1491 = vmatprep.subr.mxu0 0.0
    %1492 = vmatpush1.msra.mxu0 0.0
    %1493 = vmatprep.mubr.f32.mxu0 0.0
    %1494 = vmatmul.mubr.f32.gmra.mrb[0].mxu0 %v1427
    %v1495 = vpop.f32.mrb[0].mxu0
    %v1496 = vadd.f32 0.0, %v1495
    %v1497 = vpop.f32.mrb[0].mxu0
    %1498 = vdwg.mxu0
    %1499 = vrot.lane.b32.xlu0 %v148, 32
    %v1500 = vpop.permute.xlu0 %1499
    %1501 = vrot.lane.b32.xlu0 %v153, 32
    %v1502 = vpop.permute.xlu0 %1501
    %1503 = vrot.lane.b32.xlu0 %v159, 32
    %v1504 = vpop.permute.xlu0 %1503
    %1505 = vrot.lane.b32.xlu0 %v161, 32
    %v1506 = vpop.permute.xlu0 %1505
    %1507 = vrot.lane.b32.xlu0 %v163, 32
    %v1508 = vpop.permute.xlu0 %1507
    %1509 = vrot.lane.b32.xlu0 %v165, 32
    %v1510 = vpop.permute.xlu0 %1509
    %1511 = vrot.lane.b32.xlu0 %v167, 32
    %v1512 = vpop.permute.xlu0 %1511
    %1513 = vrot.lane.b32.xlu0 %v169, 32
    %v1514 = vpop.permute.xlu0 %1513
    %v1523 = vmul.f32 %v964, %v1500
    %v1524 = vmul.f32 %v1040, %v1502
    %v1525 = vmul.f32 %v1116, %v1504
    %v1526 = vmul.f32 %v1192, %v1506
    %v1527 = vmul.f32 %v1268, %v1508
    %v1528 = vmul.f32 %v1344, %v1510
    %v1529 = vmul.f32 %v1420, %v1512
    %v1530 = vmul.f32 %v1496, %v1514
    %1533 = vrot.lane.b32.xlu0 %v1525, 8
    %v1534 = vpop.permute.xlu0 %1533
    %1535 = vrot.lane.b32.xlu0 %v1526, 8
    %v1536 = vpop.permute.xlu0 %1535
    %1541 = vrot.lane.b32.xlu0 %v1527, 16
    %v1542 = vpop.permute.xlu0 %1541
    %1543 = vrot.lane.b32.xlu0 %v1528, 16
    %v1544 = vpop.permute.xlu0 %1543
    %1549 = vrot.lane.b32.xlu0 %v1529, 24
    %v1550 = vpop.permute.xlu0 %1549
    %1551 = vrot.lane.b32.xlu0 %v1530, 24
    %v1552 = vpop.permute.xlu0 %1551
    %v1555 = vsel %vm172, %v1523, %v1534
    %v1556 = vsel %vm172, %v1524, %v1536
    %vm1557 = vcmask 130048
    %v1558 = vsel %vm1557, %v1555, %v1542
    %v1559 = vsel %vm1557, %v1556, %v1544
    %vm1560 = vcmask 195584
    %v1561 = vsel %vm1560, %v1558, %v1550
    %v1562 = vsel %vm1560, %v1559, %v1552
    %v1563 = vrot.slane %v67, 1
    %v1564 = vlaneseq
    %v1565 = vshrl.u32 %v1564, 7
    %v1566 = vsub.s32 0, %v1565
    %v1567 = vrot.slane %v1563, %v1566
    %v1570 = vsel %vm74, %v1561, 0
    %v1573 = vsel %vm74, %v1562, 0
    %1575 = vmatprep.subr.mxu0 0.0
    %1576 = vmatpush1.msra.mxu0 %v62
    %1577 = vmatprep.subr.mxu0 0.0
    %1578 = vmatpush1.msra.mxu0 %v63
    %1579 = vmatprep.subr.mxu0 0.0
    %1580 = vmatpush1.msra.mxu0 %v64
    %1581 = vmatprep.subr.mxu0 0.0
    %1582 = vmatpush1.msra.mxu0 %v65
    %1583 = vmatprep.subr.mxu0 0.0
    %1584 = vmatpush1.msra.mxu0 0.0
    %1585 = vmatprep.subr.mxu0 0.0
    %1586 = vmatpush1.msra.mxu0 0.0
    %1587 = vmatprep.subr.mxu0 0.0
    %1588 = vmatpush1.msra.mxu0 0.0
    %1589 = vmatprep.subr.mxu0 0.0
    %1590 = vmatpush1.msra.mxu0 0.0
    %1591 = vmatprep.subr.mxu0 0.0
    %1592 = vmatpush1.msra.mxu0 0.0
    %1593 = vmatprep.subr.mxu0 0.0
    %1594 = vmatpush1.msra.mxu0 0.0
    %1595 = vmatprep.subr.mxu0 0.0
    %1596 = vmatpush1.msra.mxu0 0.0
    %1597 = vmatprep.subr.mxu0 0.0
    %1598 = vmatpush1.msra.mxu0 0.0
    %1599 = vmatprep.subr.mxu0 0.0
    %1600 = vmatpush1.msra.mxu0 0.0
    %1601 = vmatprep.subr.mxu0 0.0
    %1602 = vmatpush1.msra.mxu0 0.0
    %1603 = vmatprep.subr.mxu0 0.0
    %1604 = vmatpush1.msra.mxu0 0.0
    %1605 = vmatprep.subr.mxu0 0.0
    %1606 = vmatpush1.msra.mxu0 0.0
    %1607 = vmatprep.subr.mxu0 0.0
    %1608 = vmatpush1.msra.mxu0 0.0
    %1609 = vmatprep.subr.mxu0 0.0
    %1610 = vmatpush1.msra.mxu0 0.0
    %1611 = vmatprep.subr.mxu0 0.0
    %1612 = vmatpush1.msra.mxu0 0.0
    %1613 = vmatprep.subr.mxu0 0.0
    %1614 = vmatpush1.msra.mxu0 0.0
    %1615 = vmatprep.subr.mxu0 0.0
    %1616 = vmatpush1.msra.mxu0 0.0
    %1617 = vmatprep.subr.mxu0 0.0
    %1618 = vmatpush1.msra.mxu0 0.0
    %1619 = vmatprep.subr.mxu0 0.0
    %1620 = vmatpush1.msra.mxu0 0.0
    %1621 = vmatprep.subr.mxu0 0.0
    %1622 = vmatpush1.msra.mxu0 0.0
    %1623 = vmatprep.subr.mxu0 0.0
    %1624 = vmatpush1.msra.mxu0 0.0
    %1625 = vmatprep.subr.mxu0 0.0
    %1626 = vmatpush1.msra.mxu0 0.0
    %1627 = vmatprep.subr.mxu0 0.0
    %1628 = vmatpush1.msra.mxu0 0.0
    %1629 = vmatprep.subr.mxu0 0.0
    %1630 = vmatpush1.msra.mxu0 0.0
    %1631 = vmatprep.subr.mxu0 0.0
    %1632 = vmatpush1.msra.mxu0 0.0
    %1633 = vmatprep.subr.mxu0 0.0
    %1634 = vmatpush1.msra.mxu0 0.0
    %1635 = vmatprep.subr.mxu0 0.0
    %1636 = vmatpush1.msra.mxu0 0.0
    %1637 = vmatprep.subr.mxu0 0.0
    %1638 = vmatpush1.msra.mxu0 0.0
    %1639 = vmatprep.mubr.f32.mxu0 0.0
    %1640 = vmatmul.mubr.f32.gmra.mrb[0].mxu0 %v1570
    %v1641 = vpop.f32.mrb[0].mxu0
    %v1642 = vadd.f32 %v1567, %v1641
    %v1643 = vpop.f32.mrb[0].mxu0
    %1644 = vmatprep.mubr.f32.mxu0 0.0
    %1645 = vmatmul.mubr.f32.gmra.mrb[0].mxu0 %v1573
    %v1646 = vpop.f32.mrb[0].mxu0
    %v1647 = vadd.f32 %v1567, %v1646
    %v1648 = vpop.f32.mrb[0].mxu0
    %1649 = vdwg.mxu0
    %1650 = vst.msk [vmem:[#allocation8] sm:$0xff] %vm74, %v1642
    %1651 = vst.msk [vmem:[#allocation8 + $0x8] sm:$0xff] %vm74, %v1647
    // Predicated region
    $region26: #{self_attention.1} parent=1 // pred_check
      _
    $region27: #{self_attention.1} parent=1 // pred_check_branch
      %1653 = sbr.rel (0) target = $region29
    $region28: #{self_attention.1} parent=1 // pred_region
      %s1655 = ssub.s32 256, 256
      %1656 = vsyncadd [#allocation4], %s1655
      %s1657 = sshll.u32 [#allocation8], 4
      %s1658 = int_to_ptr.vmem [resolvable:$true] %s1657
      %1663 = dma.vmem_to_hbm [thread:$0]  %s1658, 256, %s3, [#allocation4], 128, 128, 8
    $region29: #{self_attention.1} parent=1 // pred_fallthru
      _
    // Predicated region
    $region30: #{self_attention.1} parent=1 // pred_check
      _
    $region31: #{self_attention.1} parent=1 // pred_check_branch
      %1665 = sbr.rel (0) target = $region33
    $region32: #{self_attention.1} parent=1 // pred_region
      %1666 = dma.done [#allocation4], 256
    $region33: #{self_attention.1} parent=1 // pred_fallthru
      _
    %1667 = vsyncpa [#allocation3], 1
    %1668 = vsyncpa [#allocation6], 1
    %1669 = vsyncpa [#allocation4], 1

</llo_original>
